<compile_context>
chip_gen: v5e
topology: v5e:2x2
jax: 0.10.0
libtpu: 0.0.40
codegen_flags: <defaults>
</compile_context>

<pallas_src>
import math
import functools

import jax
import jax.numpy as jnp
from jax.experimental import pallas as pl
from jax.experimental.pallas import tpu as pltpu


def _gates(g, E):
    """PyTorch LSTM gate order: i, f, g, o."""
    i = jax.nn.sigmoid(g[:, 0 * E:1 * E])
    f = jax.nn.sigmoid(g[:, 1 * E:2 * E])
    gg = jnp.tanh(g[:, 2 * E:3 * E])
    o = jax.nn.sigmoid(g[:, 3 * E:4 * E])
    return i, f, gg, o


# ----------------------------------------------------------------------------
# Fused kernel: whole forward pass in one program (all operands fit in VMEM at
# these sizes; a single program avoids per-grid-step pipeline overhead and all
# intermediate HBM traffic).
# ----------------------------------------------------------------------------
def aoa_decoder_fused_kernel(num_heads, ln_eps,
                             feat_ref,    # (B, N, E)  image features
                             emb_ref,     # (B, S, E)  embedded captions
                             wih0f_ref,   # (E, 4E)    LSTM0 input weights (feature half)
                             wih0e_ref,   # (E, 4E)    LSTM0 input weights (embedding half)
                             whh0_ref,    # (E, 4E)
                             w1_ref,      # (2E, 4E)   [wih1; whh1] stacked
                             b01_ref,     # (2, 4E)    rows: [b_ih0+b_hh0, b_ih1+b_hh1]
                             wq_ref,      # (E, E)     pre-scaled by 1/sqrt(dk)
                             wkv_ref,     # (E, 2E)    [wk | wv]
                             waoa_ref,    # (2E, 2E)
                             wo_ref,      # (E, E)
                             wf_ref,      # (E, Vpad)  vocab proj, zero-padded to 128 lanes
                             b2e_ref,     # (2, 2E)    rows: [bk|bv, b_aoa]
                             brow_ref,    # (4, E)     rows: [bq*scale, bo, ln_a, ln_b]
                             bf_ref,      # (1, Vpad)
                             out_ref):    # (B*S, Vpad)
    B, N, E = feat_ref.shape
    S = emb_ref.shape[1]
    H = num_heads
    dk = E // H

    feats = feat_ref[...]                                  # (B, N, E)
    emb = emb_ref[...]                                     # (B, S, E)

    # unpack the stacked bias rows (sublane slices only — no lane rotations)
    b0 = b01_ref[0:1, :]                                   # (1, 4E)
    b1 = b01_ref[1:2, :]
    bkv = b2e_ref[0:1, :]                                  # (1, 2E)
    baoa = b2e_ref[1:2, :]
    bq = brow_ref[0:1, :]                                  # (1, E) pre-scaled
    bo = brow_ref[1:2, :]
    lna = brow_ref[2:3, :]
    lnb = brow_ref[3:4, :]

    # ---- glue fused in-kernel: mean over image regions (torch.mean + expand).
    feat_mean = jnp.mean(feats, axis=1)                    # (B, E)

    # ---- LSTM layer-0 input projection hoisted OUT of the recurrence:
    #      x_t = [feat_mean[t] (bcast over S), emb[t]]  =>
    #      x_t @ wih0 = feat_mean[t] @ wih0_f + emb[t] @ wih0_e
    g0_emb = jnp.dot(emb.reshape(B * S, E), wih0e_ref[...],
                     preferred_element_type=jnp.float32)   # (B*S, 4E)
    g0_feat = jnp.dot(feat_mean, wih0f_ref[...],
                      preferred_element_type=jnp.float32)  # (B, 4E)
    g0_all = (g0_emb.reshape(B, S, 4 * E)
              + g0_feat.reshape(B, 1, 4 * E)
              + b0.reshape(1, 1, 4 * E))                   # bias folded in once

    whh0 = whh0_ref[...]
    w1 = w1_ref[...]
    b1_b = jnp.broadcast_to(b1, (S, 4 * E))                # hoisted broadcast

    h0 = jnp.zeros((S, E), jnp.float32)
    c0 = jnp.zeros((S, E), jnp.float32)
    h1 = jnp.zeros((S, E), jnp.float32)
    c1 = jnp.zeros((S, E), jnp.float32)

    # NOTE: nn.LSTM in the reference is batch_first=False, so the *decoder
    # batch* axis is the LSTM time axis and the caption sequence is the LSTM
    # batch — this quirk is replicated exactly (state carried across batch).
    # TODO(synk): for large B switch this unrolled loop to lax.fori_loop with a
    # VMEM scratch for the LSTM outputs to bound vreg live ranges (B=2 here).
    lstm_rows = []
    for t in range(B):
        # layer 0: only the unavoidable serial h @ whh0 dot stays in the loop
        g0 = g0_all[t] + jnp.dot(h0, whh0, preferred_element_type=jnp.float32)
        i0, f0, gg0, o0 = _gates(g0, E)
        c0 = f0 * c0 + i0 * gg0
        h0 = o0 * jnp.tanh(c0)
        # layer 1: fuse the two per-cell dots into a single MXU matmul
        g1 = jnp.dot(jnp.concatenate([h0, h1], axis=1), w1,
                     preferred_element_type=jnp.float32) + b1_b
        i1, f1, gg1, o1 = _gates(g1, E)
        c1 = f1 * c1 + i1 * gg1
        h1 = o1 * jnp.tanh(c1)
        lstm_rows.append(h1)

    x_flat = jnp.concatenate(lstm_rows, axis=0)            # (B*S, E), b-major

    # ---- multi-head attention: Q and fused K/V projections over all rows.
    q = jnp.dot(x_flat, wq_ref[...],
                preferred_element_type=jnp.float32) + bq   # (B*S, E), pre-scaled
    fflat = feats.reshape(B * N, E)
    kv = jnp.dot(fflat, wkv_ref[...],
                 preferred_element_type=jnp.float32) + bkv  # (B*N, 2E)

    q3 = q.reshape(B, S, E)
    k3 = kv[:, :E].reshape(B, N, E)
    v3 = kv[:, E:].reshape(B, N, E)

    head_ctx = []
    for h in range(H):                                     # static, tiny H
        lo = h * dk
        qh = q3[:, :, lo:lo + dk]                          # (B, S, dk)
        kh = k3[:, :, lo:lo + dk]                          # (B, N, dk)
        vh = v3[:, :, lo:lo + dk]
        s = jnp.einsum('bsd,bnd->bsn', qh, kh,
                       preferred_element_type=jnp.float32)  # scale baked into wq
        s = s - jnp.max(s, axis=-1, keepdims=True)
        e = jnp.exp(s)
        p = e * pl.reciprocal(jnp.sum(e, axis=-1, keepdims=True), approx=True)
        head_ctx.append(jnp.einsum('bsn,bnd->bsd', p, vh,
                                   preferred_element_type=jnp.float32))
    attended = jnp.concatenate(head_ctx, axis=-1).reshape(B * S, E)

    # ---- AoA layer: Linear(2E -> 2E) + GLU, then output linear.
    aoa_in = jnp.concatenate([attended, x_flat], axis=1)   # (B*S, 2E)
    aoa = jnp.dot(aoa_in, waoa_ref[...],
                  preferred_element_type=jnp.float32) + baoa
    glu = aoa[:, :E] * jax.nn.sigmoid(aoa[:, E:])
    att_out = jnp.dot(glu, wo_ref[...],
                      preferred_element_type=jnp.float32) + bo

    # ---- module's hand-rolled LayerNorm: unbiased std (N-1), eps added to std.
    mean = jnp.mean(att_out, axis=-1, keepdims=True)
    d = att_out - mean
    std = jnp.sqrt(jnp.sum(d * d, axis=-1, keepdims=True) * (1.0 / (E - 1)))
    ln = lna * d * pl.reciprocal(std + ln_eps, approx=True) + lnb

    resid = x_flat + ln                                    # residual connection

    # ---- final vocab projection — the only HBM write (lane-dense, Vpad%128==0)
    out_ref[...] = (jnp.dot(resid, wf_ref[...],
                            preferred_element_type=jnp.float32) + bf_ref[...])


# ----------------------------------------------------------------------------
# Wrapper: parameter re-plumbing + single pallas_call.
# ----------------------------------------------------------------------------
def aoa_decoder_core(features, captions_ids, params, num_heads, ln_eps=1e-6):
    B, N, E = features.shape
    S = captions_ids.shape[1]
    V = params['wf'].shape[1]
    Vpad = ((V + 127) // 128) * 128
    dk = E // num_heads
    scale = 1.0 / math.sqrt(dk)

    # TODO(synk): embedding gather stays in XLA; for a large vocab move it
    # in-kernel via PrefetchScalarGridSpec scalar-prefetched token ids.
    embedded = jnp.take(params['emb'], captions_ids, axis=0)          # (B, S, E)

    # Fold-once parameter re-plumbing (would be pre-baked offline in practice):
    #   split wih0 so the (B,S,2E) concat never materializes, stack layer-1
    #   weights for the fused per-step matmul, fuse [wk|wv], fold the 1/sqrt(dk)
    #   score scale into wq/bq, pack small bias rows by lane width, and pad
    #   wf/bf to 128 lanes for lane-dense output stores.
    wih0f = params['wih0'][:E]
    wih0e = params['wih0'][E:]
    w1 = jnp.concatenate([params['wih1'], params['whh1']], axis=0)    # (2E, 4E)
    b01 = jnp.concatenate([params['b0'], params['b1']], axis=0)       # (2, 4E)
    wq_s = params['wq'] * scale
    wkv = jnp.concatenate([params['wk'], params['wv']], axis=1)       # (E, 2E)
    b2e = jnp.concatenate(
        [jnp.concatenate([params['bk'], params['bv']], axis=1),       # (1, 2E)
         params['baoa']], axis=0)                                     # (2, 2E)
    brow = jnp.concatenate([params['bq'] * scale, params['bo'],
                            params['lna'], params['lnb']], axis=0)    # (4, E)
    wf_pad = jnp.pad(params['wf'], ((0, 0), (0, Vpad - V)))
    bf_pad = jnp.pad(params['bf'], ((0, 0), (0, Vpad - V)))

    vspec = pl.BlockSpec(memory_space=pltpu.MemorySpace.VMEM)
    kernel = functools.partial(aoa_decoder_fused_kernel, num_heads, ln_eps)

    # TODO(synk): at realistic sizes (E~1024, vocab~10k) add parallel grid axes
    # over (B*S)-row tiles and 512-1024-wide vocab-column tiles for the final
    # projection (streams wf instead of keeping it VMEM-resident — required on
    # v7x's 64 MiB VMEM) and split the LSTM's S axis across TensorCores.
    out_flat = pl.pallas_call(
        kernel,
        out_shape=jax.ShapeDtypeStruct((B * S, Vpad), jnp.float32),
        in_specs=[vspec] * 15,
        out_specs=vspec,
        compiler_params=pltpu.CompilerParams(
            vmem_limit_bytes=32 * 1024 * 1024),
    )(features, embedded,
      wih0f, wih0e, params['whh0'], w1, b01,
      wq_s, wkv, params['waoa'], params['wo'], wf_pad,
      b2e, brow, bf_pad)

    # TODO(synk): nn.Dropout layers (p_attn, residual, output) are stochastic
    # in train mode; implemented as eval-mode identity.
    return out_flat.reshape(B, S, Vpad)[:, :, :V]


# ----------------------------------------------------------------------------
# Pure-JAX reference (same math, no Pallas) for the correctness check.
# ----------------------------------------------------------------------------
def reference_forward(features, captions_ids, p, num_heads, ln_eps=1e-6):
    Bd, N, E = features.shape
    S = captions_ids.shape[1]
    feat_mean = jnp.mean(features, axis=1, keepdims=True)
    features_ = jnp.broadcast_to(feat_mean, (Bd, S, E))
    embedded = jnp.take(p['emb'], captions_ids, axis=0)
    x = jnp.concatenate([features_, embedded], axis=2)

    def cell(x_t, h, c, wih, whh, b):
        g = x_t @ wih + h @ whh + b
        i = jax.nn.sigmoid(g[:, :E])
        f = jax.nn.sigmoid(g[:, E:2 * E])
        gg = jnp.tanh(g[:, 2 * E:3 * E])
        o = jax.nn.sigmoid(g[:, 3 * E:])
        c = f * c + i * gg
        return o * jnp.tanh(c), c

    h0 = c0 = h1 = c1 = jnp.zeros((S, E), jnp.float32)
    outs = []
    for t in range(Bd):
        h0, c0 = cell(x[t], h0, c0, p['wih0'], p['whh0'], p['b0'])
        h1, c1 = cell(h0, h1, c1, p['wih1'], p['whh1'], p['b1'])
        outs.append(h1)
    lstm_out = jnp.stack(outs, axis=0)

    dk = E // num_heads
    res = []
    for b in range(Bd):
        xq = lstm_out[b]
        f = features[b]
        q = xq @ p['wq'] + p['bq']
        k = f @ p['wk'] + p['bk']
        v = f @ p['wv'] + p['bv']
        heads = []
        for h in range(num_heads):
            qh = q[:, h * dk:(h + 1) * dk]
            kh = k[:, h * dk:(h + 1) * dk]
            vh = v[:, h * dk:(h + 1) * dk]
            s = qh @ kh.T / math.sqrt(dk)
            heads.append(jax.nn.softmax(s, axis=-1) @ vh)
        attended = jnp.concatenate(heads, axis=1)
        aoa = jnp.concatenate([attended, xq], axis=1) @ p['waoa'] + p['baoa']
        glu = aoa[:, :E] * jax.nn.sigmoid(aoa[:, E:])
        att_out = glu @ p['wo'] + p['bo']
        mean = jnp.mean(att_out, axis=-1, keepdims=True)
        d = att_out - mean
        std = jnp.sqrt(jnp.sum(d * d, axis=-1, keepdims=True) / (E - 1))
        ln = p['lna'] * d / (std + ln_eps) + p['lnb']
        res.append((xq + ln) @ p['wf'] + p['bf'])
    return jnp.stack(res, axis=0)


if __name__ == "__main__":
    B, N, S = 2, 16, 8        # decoder batch, image regions, caption length
    E, H, V = 32, 4, 40       # embedding size, heads, vocab size

    key = jax.random.PRNGKey(0)
    keys = jax.random.split(key, 20)

    def init(k, shape, scale=0.08):
        return scale * jax.random.normal(k, shape, jnp.float32)

    params = {
        'emb':  init(keys[0], (V, E)),
        # LSTM weights pre-transposed: (in, 4E) / (E, 4E); biases = b_ih + b_hh
        'wih0': init(keys[1], (2 * E, 4 * E)),
        'whh0': init(keys[2], (E, 4 * E)),
        'b0':   init(keys[3], (1, 4 * E)),
        'wih1': init(keys[4], (E, 4 * E)),
        'whh1': init(keys[5], (E, 4 * E)),
        'b1':   init(keys[6], (1, 4 * E)),
        # attention / AoA / output head (all Linear weights pre-transposed)
        'wq':   init(keys[7], (E, E)),
        'bq':   init(keys[8], (1, E)),
        'wk':   init(keys[9], (E, E)),
        'bk':   init(keys[10], (1, E)),
        'wv':   init(keys[11], (E, E)),
        'bv':   init(keys[12], (1, E)),
        'waoa': init(keys[13], (2 * E, 2 * E)),
        'baoa': init(keys[14], (1, 2 * E)),
        'wo':   init(keys[15], (E, E)),
        'bo':   init(keys[16], (1, E)),
        'lna':  jnp.ones((1, E), jnp.float32),
        'lnb':  jnp.zeros((1, E), jnp.float32),
        'wf':   init(keys[17], (E, V)),
        'bf':   init(keys[18], (1, V)),
    }

    features = init(keys[19], (B, N, E), scale=1.0)
    captions_ids = jax.random.randint(jax.random.PRNGKey(1), (B, S), 0, V)

    out = aoa_decoder_core(features, captions_ids, params, H)
    out = jax.block_until_ready(out)

    ref = reference_forward(features, captions_ids, params, H)
    assert out.shape == (B, S, V), out.shape
    max_err = float(jnp.max(jnp.abs(out - ref)))
    # Tolerance covers pl.reciprocal(approx=True) in softmax/LayerNorm and
    # matmul reassociation from the fused/hoisted/pre-scaled projections.
    assert max_err < 3e-3, f"max abs err {max_err}"

    print("KERNEL_OK")
</pallas_src>

<mosaic_0001>
module attributes {stable_mosaic.version = 11 : i64} {
  func.func @aoa_decoder_fused_kernel(%arg0: memref<2x16x32xf32, #tpu.memory_space<vmem>>, %arg1: memref<2x8x32xf32, #tpu.memory_space<vmem>>, %arg2: memref<32x128xf32, #tpu.memory_space<vmem>>, %arg3: memref<32x128xf32, #tpu.memory_space<vmem>>, %arg4: memref<32x128xf32, #tpu.memory_space<vmem>>, %arg5: memref<64x128xf32, #tpu.memory_space<vmem>>, %arg6: memref<2x128xf32, #tpu.memory_space<vmem>>, %arg7: memref<32x32xf32, #tpu.memory_space<vmem>>, %arg8: memref<32x64xf32, #tpu.memory_space<vmem>>, %arg9: memref<64x64xf32, #tpu.memory_space<vmem>>, %arg10: memref<32x32xf32, #tpu.memory_space<vmem>>, %arg11: memref<32x128xf32, #tpu.memory_space<vmem>>, %arg12: memref<2x64xf32, #tpu.memory_space<vmem>>, %arg13: memref<4x32xf32, #tpu.memory_space<vmem>>, %arg14: memref<1x128xf32, #tpu.memory_space<vmem>>, %arg15: memref<16x128xf32, #tpu.memory_space<vmem>>) attributes {dimension_semantics = [], scalar_prefetch = 0 : i64, scratch_operands = 0 : i64, tpu.core_type = #tpu.core_type<tc>} {
    %c0 = arith.constant 0 : index
    %c0_0 = arith.constant 0 : index
    %c0_1 = arith.constant 0 : index
    %0 = vector.load %arg0[%c0, %c0_0, %c0_1] : memref<2x16x32xf32, #tpu.memory_space<vmem>>, vector<2x16x32xf32>
    %c0_2 = arith.constant 0 : index
    %c0_3 = arith.constant 0 : index
    %c0_4 = arith.constant 0 : index
    %1 = vector.load %arg1[%c0_2, %c0_3, %c0_4] : memref<2x8x32xf32, #tpu.memory_space<vmem>>, vector<2x8x32xf32>
    %c0_5 = arith.constant 0 : index
    %c0_6 = arith.constant 0 : index
    %2 = vector.load %arg6[%c0_5, %c0_6] : memref<2x128xf32, #tpu.memory_space<vmem>>, vector<1x128xf32>
    %c1 = arith.constant 1 : index
    %c0_7 = arith.constant 0 : index
    %3 = vector.load %arg6[%c1, %c0_7] : memref<2x128xf32, #tpu.memory_space<vmem>>, vector<1x128xf32>
    %c0_8 = arith.constant 0 : index
    %c0_9 = arith.constant 0 : index
    %4 = vector.load %arg12[%c0_8, %c0_9] : memref<2x64xf32, #tpu.memory_space<vmem>>, vector<1x64xf32>
    %c1_10 = arith.constant 1 : index
    %c0_11 = arith.constant 0 : index
    %5 = vector.load %arg12[%c1_10, %c0_11] : memref<2x64xf32, #tpu.memory_space<vmem>>, vector<1x64xf32>
    %c0_12 = arith.constant 0 : index
    %c0_13 = arith.constant 0 : index
    %6 = vector.load %arg13[%c0_12, %c0_13] : memref<4x32xf32, #tpu.memory_space<vmem>>, vector<1x32xf32>
    %c1_14 = arith.constant 1 : index
    %c0_15 = arith.constant 0 : index
    %7 = vector.load %arg13[%c1_14, %c0_15] : memref<4x32xf32, #tpu.memory_space<vmem>>, vector<1x32xf32>
    %c2 = arith.constant 2 : index
    %c0_16 = arith.constant 0 : index
    %8 = vector.load %arg13[%c2, %c0_16] : memref<4x32xf32, #tpu.memory_space<vmem>>, vector<1x32xf32>
    %c3 = arith.constant 3 : index
    %c0_17 = arith.constant 0 : index
    %9 = vector.load %arg13[%c3, %c0_17] : memref<4x32xf32, #tpu.memory_space<vmem>>, vector<1x32xf32>
    %cst = arith.constant dense<0.000000e+00> : vector<2x32xf32>
    %10 = vector.multi_reduction <add>, %0, %cst [1] : vector<2x16x32xf32> to vector<2x32xf32>
    %cst_18 = arith.constant 1.600000e+01 : f32
    %11 = vector.broadcast %cst_18 : f32 to vector<2x32xf32>
    %12 = arith.divf %10, %11 : vector<2x32xf32>
    %13 = vector.shape_cast %1 : vector<2x8x32xf32> to vector<16x32xf32>
    %c0_19 = arith.constant 0 : index
    %c0_20 = arith.constant 0 : index
    %14 = vector.load %arg3[%c0_19, %c0_20] : memref<32x128xf32, #tpu.memory_space<vmem>>, vector<32x128xf32>
    %cst_21 = arith.constant dense<0.000000e+00> : vector<16x128xf32>
    %15 = tpu.matmul %13, %14, %cst_21 {dimension_numbers = #tpu.dot_dimension_numbers<[1], [0], [0], [1], [0, 0, 1, 1], [], []>} : vector<16x32xf32>, vector<32x128xf32>, vector<16x128xf32> -> vector<16x128xf32>
    %c0_22 = arith.constant 0 : index
    %c0_23 = arith.constant 0 : index
    %16 = vector.load %arg2[%c0_22, %c0_23] : memref<32x128xf32, #tpu.memory_space<vmem>>, vector<32x128xf32>
    %cst_24 = arith.constant dense<0.000000e+00> : vector<2x128xf32>
    %17 = tpu.matmul %12, %16, %cst_24 {dimension_numbers = #tpu.dot_dimension_numbers<[1], [0], [0], [1], [0, 0, 1, 1], [], []>} : vector<2x32xf32>, vector<32x128xf32>, vector<2x128xf32> -> vector<2x128xf32>
    %18 = vector.shape_cast %15 : vector<16x128xf32> to vector<2x8x128xf32>
    %19 = vector.shape_cast %17 : vector<2x128xf32> to vector<2x1x128xf32>
    %20 = vector.broadcast %19 : vector<2x1x128xf32> to vector<2x8x128xf32>
    %21 = arith.addf %18, %20 : vector<2x8x128xf32>
    %22 = vector.shape_cast %2 : vector<1x128xf32> to vector<1x1x128xf32>
    %23 = vector.broadcast %22 : vector<1x1x128xf32> to vector<2x8x128xf32>
    %24 = arith.addf %21, %23 : vector<2x8x128xf32>
    %c0_25 = arith.constant 0 : index
    %c0_26 = arith.constant 0 : index
    %25 = vector.load %arg4[%c0_25, %c0_26] : memref<32x128xf32, #tpu.memory_space<vmem>>, vector<32x128xf32>
    %c0_27 = arith.constant 0 : index
    %c0_28 = arith.constant 0 : index
    %26 = vector.load %arg5[%c0_27, %c0_28] : memref<64x128xf32, #tpu.memory_space<vmem>>, vector<64x128xf32>
    %27 = vector.shape_cast %3 : vector<1x128xf32> to vector<1x128xf32>
    %28 = vector.broadcast %27 : vector<1x128xf32> to vector<8x128xf32>
    %cst_29 = arith.constant 0.000000e+00 : f32
    %29 = vector.broadcast %cst_29 : f32 to vector<8x32xf32>
    %cst_30 = arith.constant 0.000000e+00 : f32
    %30 = vector.broadcast %cst_30 : f32 to vector<8x32xf32>
    %cst_31 = arith.constant 0.000000e+00 : f32
    %31 = vector.broadcast %cst_31 : f32 to vector<8x32xf32>
    %cst_32 = arith.constant 0.000000e+00 : f32
    %32 = vector.broadcast %cst_32 : f32 to vector<8x32xf32>
    %33 = vector.extract_strided_slice %24 {offsets = [0, 0, 0], sizes = [1, 8, 128], strides = [1, 1, 1]} : vector<2x8x128xf32> to vector<1x8x128xf32>
    %34 = vector.shape_cast %33 : vector<1x8x128xf32> to vector<8x128xf32>
    %cst_33 = arith.constant dense<0.000000e+00> : vector<8x128xf32>
    %35 = tpu.matmul %29, %25, %cst_33 {dimension_numbers = #tpu.dot_dimension_numbers<[1], [0], [0], [1], [0, 0, 1, 1], [], []>} : vector<8x32xf32>, vector<32x128xf32>, vector<8x128xf32> -> vector<8x128xf32>
    %36 = arith.addf %34, %35 : vector<8x128xf32>
    %37 = vector.extract_strided_slice %36 {offsets = [0, 0], sizes = [8, 32], strides = [1, 1]} : vector<8x128xf32> to vector<8x32xf32>
    %38 = arith.negf %37 : vector<8x32xf32>
    %39 = math.exp %38 : vector<8x32xf32>
    %cst_34 = arith.constant 1.000000e+00 : f32
    %40 = vector.broadcast %cst_34 : f32 to vector<8x32xf32>
    %41 = arith.addf %40, %39 : vector<8x32xf32>
    %42 = arith.divf %40, %41 : vector<8x32xf32>
    %43 = vector.extract_strided_slice %36 {offsets = [0, 32], sizes = [8, 32], strides = [1, 1]} : vector<8x128xf32> to vector<8x32xf32>
    %44 = arith.negf %43 : vector<8x32xf32>
    %45 = math.exp %44 : vector<8x32xf32>
    %cst_35 = arith.constant 1.000000e+00 : f32
    %46 = vector.broadcast %cst_35 : f32 to vector<8x32xf32>
    %47 = arith.addf %46, %45 : vector<8x32xf32>
    %48 = arith.divf %46, %47 : vector<8x32xf32>
    %49 = vector.extract_strided_slice %36 {offsets = [0, 64], sizes = [8, 32], strides = [1, 1]} : vector<8x128xf32> to vector<8x32xf32>
    %50 = math.tanh %49 : vector<8x32xf32>
    %51 = vector.extract_strided_slice %36 {offsets = [0, 96], sizes = [8, 32], strides = [1, 1]} : vector<8x128xf32> to vector<8x32xf32>
    %52 = arith.negf %51 : vector<8x32xf32>
    %53 = math.exp %52 : vector<8x32xf32>
    %cst_36 = arith.constant 1.000000e+00 : f32
    %54 = vector.broadcast %cst_36 : f32 to vector<8x32xf32>
    %55 = arith.addf %54, %53 : vector<8x32xf32>
    %56 = arith.divf %54, %55 : vector<8x32xf32>
    %57 = arith.mulf %48, %30 : vector<8x32xf32>
    %58 = arith.mulf %42, %50 : vector<8x32xf32>
    %59 = arith.addf %57, %58 : vector<8x32xf32>
    %60 = math.tanh %59 : vector<8x32xf32>
    %61 = arith.mulf %56, %60 : vector<8x32xf32>
    %62 = tpu.concatenate %61, %31 in 1 : vector<8x32xf32>, vector<8x32xf32> -> vector<8x64xf32>
    %cst_37 = arith.constant dense<0.000000e+00> : vector<8x128xf32>
    %63 = tpu.matmul %62, %26, %cst_37 {dimension_numbers = #tpu.dot_dimension_numbers<[1], [0], [0], [1], [0, 0, 1, 1], [], []>} : vector<8x64xf32>, vector<64x128xf32>, vector<8x128xf32> -> vector<8x128xf32>
    %64 = arith.addf %63, %28 : vector<8x128xf32>
    %65 = vector.extract_strided_slice %64 {offsets = [0, 0], sizes = [8, 32], strides = [1, 1]} : vector<8x128xf32> to vector<8x32xf32>
    %66 = arith.negf %65 : vector<8x32xf32>
    %67 = math.exp %66 : vector<8x32xf32>
    %cst_38 = arith.constant 1.000000e+00 : f32
    %68 = vector.broadcast %cst_38 : f32 to vector<8x32xf32>
    %69 = arith.addf %68, %67 : vector<8x32xf32>
    %70 = arith.divf %68, %69 : vector<8x32xf32>
    %71 = vector.extract_strided_slice %64 {offsets = [0, 32], sizes = [8, 32], strides = [1, 1]} : vector<8x128xf32> to vector<8x32xf32>
    %72 = arith.negf %71 : vector<8x32xf32>
    %73 = math.exp %72 : vector<8x32xf32>
    %cst_39 = arith.constant 1.000000e+00 : f32
    %74 = vector.broadcast %cst_39 : f32 to vector<8x32xf32>
    %75 = arith.addf %74, %73 : vector<8x32xf32>
    %76 = arith.divf %74, %75 : vector<8x32xf32>
    %77 = vector.extract_strided_slice %64 {offsets = [0, 64], sizes = [8, 32], strides = [1, 1]} : vector<8x128xf32> to vector<8x32xf32>
    %78 = math.tanh %77 : vector<8x32xf32>
    %79 = vector.extract_strided_slice %64 {offsets = [0, 96], sizes = [8, 32], strides = [1, 1]} : vector<8x128xf32> to vector<8x32xf32>
    %80 = arith.negf %79 : vector<8x32xf32>
    %81 = math.exp %80 : vector<8x32xf32>
    %cst_40 = arith.constant 1.000000e+00 : f32
    %82 = vector.broadcast %cst_40 : f32 to vector<8x32xf32>
    %83 = arith.addf %82, %81 : vector<8x32xf32>
    %84 = arith.divf %82, %83 : vector<8x32xf32>
    %85 = arith.mulf %76, %32 : vector<8x32xf32>
    %86 = arith.mulf %70, %78 : vector<8x32xf32>
    %87 = arith.addf %85, %86 : vector<8x32xf32>
    %88 = math.tanh %87 : vector<8x32xf32>
    %89 = arith.mulf %84, %88 : vector<8x32xf32>
    %90 = vector.extract_strided_slice %24 {offsets = [1, 0, 0], sizes = [1, 8, 128], strides = [1, 1, 1]} : vector<2x8x128xf32> to vector<1x8x128xf32>
    %91 = vector.shape_cast %90 : vector<1x8x128xf32> to vector<8x128xf32>
    %cst_41 = arith.constant dense<0.000000e+00> : vector<8x128xf32>
    %92 = tpu.matmul %61, %25, %cst_41 {dimension_numbers = #tpu.dot_dimension_numbers<[1], [0], [0], [1], [0, 0, 1, 1], [], []>} : vector<8x32xf32>, vector<32x128xf32>, vector<8x128xf32> -> vector<8x128xf32>
    %93 = arith.addf %91, %92 : vector<8x128xf32>
    %94 = vector.extract_strided_slice %93 {offsets = [0, 0], sizes = [8, 32], strides = [1, 1]} : vector<8x128xf32> to vector<8x32xf32>
    %95 = arith.negf %94 : vector<8x32xf32>
    %96 = math.exp %95 : vector<8x32xf32>
    %cst_42 = arith.constant 1.000000e+00 : f32
    %97 = vector.broadcast %cst_42 : f32 to vector<8x32xf32>
    %98 = arith.addf %97, %96 : vector<8x32xf32>
    %99 = arith.divf %97, %98 : vector<8x32xf32>
    %100 = vector.extract_strided_slice %93 {offsets = [0, 32], sizes = [8, 32], strides = [1, 1]} : vector<8x128xf32> to vector<8x32xf32>
    %101 = arith.negf %100 : vector<8x32xf32>
    %102 = math.exp %101 : vector<8x32xf32>
    %cst_43 = arith.constant 1.000000e+00 : f32
    %103 = vector.broadcast %cst_43 : f32 to vector<8x32xf32>
    %104 = arith.addf %103, %102 : vector<8x32xf32>
    %105 = arith.divf %103, %104 : vector<8x32xf32>
    %106 = vector.extract_strided_slice %93 {offsets = [0, 64], sizes = [8, 32], strides = [1, 1]} : vector<8x128xf32> to vector<8x32xf32>
    %107 = math.tanh %106 : vector<8x32xf32>
    %108 = vector.extract_strided_slice %93 {offsets = [0, 96], sizes = [8, 32], strides = [1, 1]} : vector<8x128xf32> to vector<8x32xf32>
    %109 = arith.negf %108 : vector<8x32xf32>
    %110 = math.exp %109 : vector<8x32xf32>
    %cst_44 = arith.constant 1.000000e+00 : f32
    %111 = vector.broadcast %cst_44 : f32 to vector<8x32xf32>
    %112 = arith.addf %111, %110 : vector<8x32xf32>
    %113 = arith.divf %111, %112 : vector<8x32xf32>
    %114 = arith.mulf %105, %59 : vector<8x32xf32>
    %115 = arith.mulf %99, %107 : vector<8x32xf32>
    %116 = arith.addf %114, %115 : vector<8x32xf32>
    %117 = math.tanh %116 : vector<8x32xf32>
    %118 = arith.mulf %113, %117 : vector<8x32xf32>
    %119 = tpu.concatenate %118, %89 in 1 : vector<8x32xf32>, vector<8x32xf32> -> vector<8x64xf32>
    %cst_45 = arith.constant dense<0.000000e+00> : vector<8x128xf32>
    %120 = tpu.matmul %119, %26, %cst_45 {dimension_numbers = #tpu.dot_dimension_numbers<[1], [0], [0], [1], [0, 0, 1, 1], [], []>} : vector<8x64xf32>, vector<64x128xf32>, vector<8x128xf32> -> vector<8x128xf32>
    %121 = arith.addf %120, %28 : vector<8x128xf32>
    %122 = vector.extract_strided_slice %121 {offsets = [0, 0], sizes = [8, 32], strides = [1, 1]} : vector<8x128xf32> to vector<8x32xf32>
    %123 = arith.negf %122 : vector<8x32xf32>
    %124 = math.exp %123 : vector<8x32xf32>
    %cst_46 = arith.constant 1.000000e+00 : f32
    %125 = vector.broadcast %cst_46 : f32 to vector<8x32xf32>
    %126 = arith.addf %125, %124 : vector<8x32xf32>
    %127 = arith.divf %125, %126 : vector<8x32xf32>
    %128 = vector.extract_strided_slice %121 {offsets = [0, 32], sizes = [8, 32], strides = [1, 1]} : vector<8x128xf32> to vector<8x32xf32>
    %129 = arith.negf %128 : vector<8x32xf32>
    %130 = math.exp %129 : vector<8x32xf32>
    %cst_47 = arith.constant 1.000000e+00 : f32
    %131 = vector.broadcast %cst_47 : f32 to vector<8x32xf32>
    %132 = arith.addf %131, %130 : vector<8x32xf32>
    %133 = arith.divf %131, %132 : vector<8x32xf32>
    %134 = vector.extract_strided_slice %121 {offsets = [0, 64], sizes = [8, 32], strides = [1, 1]} : vector<8x128xf32> to vector<8x32xf32>
    %135 = math.tanh %134 : vector<8x32xf32>
    %136 = vector.extract_strided_slice %121 {offsets = [0, 96], sizes = [8, 32], strides = [1, 1]} : vector<8x128xf32> to vector<8x32xf32>
    %137 = arith.negf %136 : vector<8x32xf32>
    %138 = math.exp %137 : vector<8x32xf32>
    %cst_48 = arith.constant 1.000000e+00 : f32
    %139 = vector.broadcast %cst_48 : f32 to vector<8x32xf32>
    %140 = arith.addf %139, %138 : vector<8x32xf32>
    %141 = arith.divf %139, %140 : vector<8x32xf32>
    %142 = arith.mulf %133, %87 : vector<8x32xf32>
    %143 = arith.mulf %127, %135 : vector<8x32xf32>
    %144 = arith.addf %142, %143 : vector<8x32xf32>
    %145 = math.tanh %144 : vector<8x32xf32>
    %146 = arith.mulf %141, %145 : vector<8x32xf32>
    %147 = tpu.concatenate %89, %146 in 0 : vector<8x32xf32>, vector<8x32xf32> -> vector<16x32xf32>
    %c0_49 = arith.constant 0 : index
    %c0_50 = arith.constant 0 : index
    %148 = vector.load %arg7[%c0_49, %c0_50] : memref<32x32xf32, #tpu.memory_space<vmem>>, vector<32x32xf32>
    %cst_51 = arith.constant dense<0.000000e+00> : vector<16x32xf32>
    %149 = tpu.matmul %147, %148, %cst_51 {dimension_numbers = #tpu.dot_dimension_numbers<[1], [0], [0], [1], [0, 0, 1, 1], [], []>} : vector<16x32xf32>, vector<32x32xf32>, vector<16x32xf32> -> vector<16x32xf32>
    %150 = vector.broadcast %6 : vector<1x32xf32> to vector<16x32xf32>
    %151 = arith.addf %149, %150 : vector<16x32xf32>
    %152 = vector.shape_cast %0 : vector<2x16x32xf32> to vector<32x32xf32>
    %c0_52 = arith.constant 0 : index
    %c0_53 = arith.constant 0 : index
    %153 = vector.load %arg8[%c0_52, %c0_53] : memref<32x64xf32, #tpu.memory_space<vmem>>, vector<32x64xf32>
    %cst_54 = arith.constant dense<0.000000e+00> : vector<32x64xf32>
    %154 = tpu.matmul %152, %153, %cst_54 {dimension_numbers = #tpu.dot_dimension_numbers<[1], [0], [0], [1], [0, 0, 1, 1], [], []>} : vector<32x32xf32>, vector<32x64xf32>, vector<32x64xf32> -> vector<32x64xf32>
    %155 = vector.broadcast %4 : vector<1x64xf32> to vector<32x64xf32>
    %156 = arith.addf %154, %155 : vector<32x64xf32>
    %157 = vector.shape_cast %151 : vector<16x32xf32> to vector<2x8x32xf32>
    %158 = vector.extract_strided_slice %156 {offsets = [0, 0], sizes = [32, 32], strides = [1, 1]} : vector<32x64xf32> to vector<32x32xf32>
    %159 = vector.shape_cast %158 : vector<32x32xf32> to vector<2x16x32xf32>
    %160 = vector.extract_strided_slice %156 {offsets = [0, 32], sizes = [32, 32], strides = [1, 1]} : vector<32x64xf32> to vector<32x32xf32>
    %161 = vector.shape_cast %160 : vector<32x32xf32> to vector<2x16x32xf32>
    %162 = vector.extract_strided_slice %157 {offsets = [0, 0, 0], sizes = [2, 8, 8], strides = [1, 1, 1]} : vector<2x8x32xf32> to vector<2x8x8xf32>
    %163 = vector.extract_strided_slice %159 {offsets = [0, 0, 0], sizes = [2, 16, 8], strides = [1, 1, 1]} : vector<2x16x32xf32> to vector<2x16x8xf32>
    %164 = vector.extract_strided_slice %161 {offsets = [0, 0, 0], sizes = [2, 16, 8], strides = [1, 1, 1]} : vector<2x16x32xf32> to vector<2x16x8xf32>
    "tpu.trace_start"() <{level = 10 : i32, message = "bsd,bnd->bsn"}> : () -> ()
    %cst_55 = arith.constant dense<0.000000e+00> : vector<2x8x16xf32>
    %165 = tpu.matmul %162, %163, %cst_55 {dimension_numbers = #tpu.dot_dimension_numbers<[2], [2], [1], [1], [0, 0, 0, 1, 1, 1], [0], [0]>} : vector<2x8x8xf32>, vector<2x16x8xf32>, vector<2x8x16xf32> -> vector<2x8x16xf32>
    "tpu.trace_stop"() : () -> ()
    %cst_56 = arith.constant dense<0xFF800000> : vector<2x8xf32>
    %166 = vector.multi_reduction <maximumf>, %165, %cst_56 [2] : vector<2x8x16xf32> to vector<2x8xf32>
    %167 = vector.shape_cast %166 : vector<2x8xf32> to vector<2x8x1xf32>
    %168 = vector.broadcast %167 : vector<2x8x1xf32> to vector<2x8x16xf32>
    %169 = arith.subf %165, %168 : vector<2x8x16xf32>
    %170 = math.exp %169 : vector<2x8x16xf32>
    %cst_57 = arith.constant dense<0.000000e+00> : vector<2x8xf32>
    %171 = vector.multi_reduction <add>, %170, %cst_57 [2] : vector<2x8x16xf32> to vector<2x8xf32>
    %172 = vector.shape_cast %171 : vector<2x8xf32> to vector<2x8x1xf32>
    %173 = tpu.reciprocal %172 {approx = true} : vector<2x8x1xf32> -> vector<2x8x1xf32>
    %174 = vector.broadcast %173 : vector<2x8x1xf32> to vector<2x8x16xf32>
    %175 = arith.mulf %170, %174 : vector<2x8x16xf32>
    "tpu.trace_start"() <{level = 10 : i32, message = "bsn,bnd->bsd"}> : () -> ()
    %cst_58 = arith.constant dense<0.000000e+00> : vector<2x8x8xf32>
    %176 = tpu.matmul %175, %164, %cst_58 {dimension_numbers = #tpu.dot_dimension_numbers<[2], [1], [1], [2], [0, 0, 0, 1, 1, 2], [0], [0]>} : vector<2x8x16xf32>, vector<2x16x8xf32>, vector<2x8x8xf32> -> vector<2x8x8xf32>
    "tpu.trace_stop"() : () -> ()
    %177 = vector.extract_strided_slice %157 {offsets = [0, 0, 8], sizes = [2, 8, 8], strides = [1, 1, 1]} : vector<2x8x32xf32> to vector<2x8x8xf32>
    %178 = vector.extract_strided_slice %159 {offsets = [0, 0, 8], sizes = [2, 16, 8], strides = [1, 1, 1]} : vector<2x16x32xf32> to vector<2x16x8xf32>
    %179 = vector.extract_strided_slice %161 {offsets = [0, 0, 8], sizes = [2, 16, 8], strides = [1, 1, 1]} : vector<2x16x32xf32> to vector<2x16x8xf32>
    "tpu.trace_start"() <{level = 10 : i32, message = "bsd,bnd->bsn"}> : () -> ()
    %cst_59 = arith.constant dense<0.000000e+00> : vector<2x8x16xf32>
    %180 = tpu.matmul %177, %178, %cst_59 {dimension_numbers = #tpu.dot_dimension_numbers<[2], [2], [1], [1], [0, 0, 0, 1, 1, 1], [0], [0]>} : vector<2x8x8xf32>, vector<2x16x8xf32>, vector<2x8x16xf32> -> vector<2x8x16xf32>
    "tpu.trace_stop"() : () -> ()
    %cst_60 = arith.constant dense<0xFF800000> : vector<2x8xf32>
    %181 = vector.multi_reduction <maximumf>, %180, %cst_60 [2] : vector<2x8x16xf32> to vector<2x8xf32>
    %182 = vector.shape_cast %181 : vector<2x8xf32> to vector<2x8x1xf32>
    %183 = vector.broadcast %182 : vector<2x8x1xf32> to vector<2x8x16xf32>
    %184 = arith.subf %180, %183 : vector<2x8x16xf32>
    %185 = math.exp %184 : vector<2x8x16xf32>
    %cst_61 = arith.constant dense<0.000000e+00> : vector<2x8xf32>
    %186 = vector.multi_reduction <add>, %185, %cst_61 [2] : vector<2x8x16xf32> to vector<2x8xf32>
    %187 = vector.shape_cast %186 : vector<2x8xf32> to vector<2x8x1xf32>
    %188 = tpu.reciprocal %187 {approx = true} : vector<2x8x1xf32> -> vector<2x8x1xf32>
    %189 = vector.broadcast %188 : vector<2x8x1xf32> to vector<2x8x16xf32>
    %190 = arith.mulf %185, %189 : vector<2x8x16xf32>
    "tpu.trace_start"() <{level = 10 : i32, message = "bsn,bnd->bsd"}> : () -> ()
    %cst_62 = arith.constant dense<0.000000e+00> : vector<2x8x8xf32>
    %191 = tpu.matmul %190, %179, %cst_62 {dimension_numbers = #tpu.dot_dimension_numbers<[2], [1], [1], [2], [0, 0, 0, 1, 1, 2], [0], [0]>} : vector<2x8x16xf32>, vector<2x16x8xf32>, vector<2x8x8xf32> -> vector<2x8x8xf32>
    "tpu.trace_stop"() : () -> ()
    %192 = vector.extract_strided_slice %157 {offsets = [0, 0, 16], sizes = [2, 8, 8], strides = [1, 1, 1]} : vector<2x8x32xf32> to vector<2x8x8xf32>
    %193 = vector.extract_strided_slice %159 {offsets = [0, 0, 16], sizes = [2, 16, 8], strides = [1, 1, 1]} : vector<2x16x32xf32> to vector<2x16x8xf32>
    %194 = vector.extract_strided_slice %161 {offsets = [0, 0, 16], sizes = [2, 16, 8], strides = [1, 1, 1]} : vector<2x16x32xf32> to vector<2x16x8xf32>
    "tpu.trace_start"() <{level = 10 : i32, message = "bsd,bnd->bsn"}> : () -> ()
    %cst_63 = arith.constant dense<0.000000e+00> : vector<2x8x16xf32>
    %195 = tpu.matmul %192, %193, %cst_63 {dimension_numbers = #tpu.dot_dimension_numbers<[2], [2], [1], [1], [0, 0, 0, 1, 1, 1], [0], [0]>} : vector<2x8x8xf32>, vector<2x16x8xf32>, vector<2x8x16xf32> -> vector<2x8x16xf32>
    "tpu.trace_stop"() : () -> ()
    %cst_64 = arith.constant dense<0xFF800000> : vector<2x8xf32>
    %196 = vector.multi_reduction <maximumf>, %195, %cst_64 [2] : vector<2x8x16xf32> to vector<2x8xf32>
    %197 = vector.shape_cast %196 : vector<2x8xf32> to vector<2x8x1xf32>
    %198 = vector.broadcast %197 : vector<2x8x1xf32> to vector<2x8x16xf32>
    %199 = arith.subf %195, %198 : vector<2x8x16xf32>
    %200 = math.exp %199 : vector<2x8x16xf32>
    %cst_65 = arith.constant dense<0.000000e+00> : vector<2x8xf32>
    %201 = vector.multi_reduction <add>, %200, %cst_65 [2] : vector<2x8x16xf32> to vector<2x8xf32>
    %202 = vector.shape_cast %201 : vector<2x8xf32> to vector<2x8x1xf32>
    %203 = tpu.reciprocal %202 {approx = true} : vector<2x8x1xf32> -> vector<2x8x1xf32>
    %204 = vector.broadcast %203 : vector<2x8x1xf32> to vector<2x8x16xf32>
    %205 = arith.mulf %200, %204 : vector<2x8x16xf32>
    "tpu.trace_start"() <{level = 10 : i32, message = "bsn,bnd->bsd"}> : () -> ()
    %cst_66 = arith.constant dense<0.000000e+00> : vector<2x8x8xf32>
    %206 = tpu.matmul %205, %194, %cst_66 {dimension_numbers = #tpu.dot_dimension_numbers<[2], [1], [1], [2], [0, 0, 0, 1, 1, 2], [0], [0]>} : vector<2x8x16xf32>, vector<2x16x8xf32>, vector<2x8x8xf32> -> vector<2x8x8xf32>
    "tpu.trace_stop"() : () -> ()
    %207 = vector.extract_strided_slice %157 {offsets = [0, 0, 24], sizes = [2, 8, 8], strides = [1, 1, 1]} : vector<2x8x32xf32> to vector<2x8x8xf32>
    %208 = vector.extract_strided_slice %159 {offsets = [0, 0, 24], sizes = [2, 16, 8], strides = [1, 1, 1]} : vector<2x16x32xf32> to vector<2x16x8xf32>
    %209 = vector.extract_strided_slice %161 {offsets = [0, 0, 24], sizes = [2, 16, 8], strides = [1, 1, 1]} : vector<2x16x32xf32> to vector<2x16x8xf32>
    "tpu.trace_start"() <{level = 10 : i32, message = "bsd,bnd->bsn"}> : () -> ()
    %cst_67 = arith.constant dense<0.000000e+00> : vector<2x8x16xf32>
    %210 = tpu.matmul %207, %208, %cst_67 {dimension_numbers = #tpu.dot_dimension_numbers<[2], [2], [1], [1], [0, 0, 0, 1, 1, 1], [0], [0]>} : vector<2x8x8xf32>, vector<2x16x8xf32>, vector<2x8x16xf32> -> vector<2x8x16xf32>
    "tpu.trace_stop"() : () -> ()
    %cst_68 = arith.constant dense<0xFF800000> : vector<2x8xf32>
    %211 = vector.multi_reduction <maximumf>, %210, %cst_68 [2] : vector<2x8x16xf32> to vector<2x8xf32>
    %212 = vector.shape_cast %211 : vector<2x8xf32> to vector<2x8x1xf32>
    %213 = vector.broadcast %212 : vector<2x8x1xf32> to vector<2x8x16xf32>
    %214 = arith.subf %210, %213 : vector<2x8x16xf32>
    %215 = math.exp %214 : vector<2x8x16xf32>
    %cst_69 = arith.constant dense<0.000000e+00> : vector<2x8xf32>
    %216 = vector.multi_reduction <add>, %215, %cst_69 [2] : vector<2x8x16xf32> to vector<2x8xf32>
    %217 = vector.shape_cast %216 : vector<2x8xf32> to vector<2x8x1xf32>
    %218 = tpu.reciprocal %217 {approx = true} : vector<2x8x1xf32> -> vector<2x8x1xf32>
    %219 = vector.broadcast %218 : vector<2x8x1xf32> to vector<2x8x16xf32>
    %220 = arith.mulf %215, %219 : vector<2x8x16xf32>
    "tpu.trace_start"() <{level = 10 : i32, message = "bsn,bnd->bsd"}> : () -> ()
    %cst_70 = arith.constant dense<0.000000e+00> : vector<2x8x8xf32>
    %221 = tpu.matmul %220, %209, %cst_70 {dimension_numbers = #tpu.dot_dimension_numbers<[2], [1], [1], [2], [0, 0, 0, 1, 1, 2], [0], [0]>} : vector<2x8x16xf32>, vector<2x16x8xf32>, vector<2x8x8xf32> -> vector<2x8x8xf32>
    "tpu.trace_stop"() : () -> ()
    %222 = tpu.concatenate %176, %191, %206, %221 in 2 : vector<2x8x8xf32>, vector<2x8x8xf32>, vector<2x8x8xf32>, vector<2x8x8xf32> -> vector<2x8x32xf32>
    %223 = vector.shape_cast %222 : vector<2x8x32xf32> to vector<16x32xf32>
    %224 = tpu.concatenate %223, %147 in 1 : vector<16x32xf32>, vector<16x32xf32> -> vector<16x64xf32>
    %c0_71 = arith.constant 0 : index
    %c0_72 = arith.constant 0 : index
    %225 = vector.load %arg9[%c0_71, %c0_72] : memref<64x64xf32, #tpu.memory_space<vmem>>, vector<64x64xf32>
    %cst_73 = arith.constant dense<0.000000e+00> : vector<16x64xf32>
    %226 = tpu.matmul %224, %225, %cst_73 {dimension_numbers = #tpu.dot_dimension_numbers<[1], [0], [0], [1], [0, 0, 1, 1], [], []>} : vector<16x64xf32>, vector<64x64xf32>, vector<16x64xf32> -> vector<16x64xf32>
    %227 = vector.broadcast %5 : vector<1x64xf32> to vector<16x64xf32>
    %228 = arith.addf %226, %227 : vector<16x64xf32>
    %229 = vector.extract_strided_slice %228 {offsets = [0, 0], sizes = [16, 32], strides = [1, 1]} : vector<16x64xf32> to vector<16x32xf32>
    %230 = vector.extract_strided_slice %228 {offsets = [0, 32], sizes = [16, 32], strides = [1, 1]} : vector<16x64xf32> to vector<16x32xf32>
    %231 = arith.negf %230 : vector<16x32xf32>
    %232 = math.exp %231 : vector<16x32xf32>
    %cst_74 = arith.constant 1.000000e+00 : f32
    %233 = vector.broadcast %cst_74 : f32 to vector<16x32xf32>
    %234 = arith.addf %233, %232 : vector<16x32xf32>
    %235 = arith.divf %233, %234 : vector<16x32xf32>
    %236 = arith.mulf %229, %235 : vector<16x32xf32>
    %c0_75 = arith.constant 0 : index
    %c0_76 = arith.constant 0 : index
    %237 = vector.load %arg10[%c0_75, %c0_76] : memref<32x32xf32, #tpu.memory_space<vmem>>, vector<32x32xf32>
    %cst_77 = arith.constant dense<0.000000e+00> : vector<16x32xf32>
    %238 = tpu.matmul %236, %237, %cst_77 {dimension_numbers = #tpu.dot_dimension_numbers<[1], [0], [0], [1], [0, 0, 1, 1], [], []>} : vector<16x32xf32>, vector<32x32xf32>, vector<16x32xf32> -> vector<16x32xf32>
    %239 = vector.broadcast %7 : vector<1x32xf32> to vector<16x32xf32>
    %240 = arith.addf %238, %239 : vector<16x32xf32>
    %cst_78 = arith.constant dense<0.000000e+00> : vector<16xf32>
    %241 = vector.multi_reduction <add>, %240, %cst_78 [1] : vector<16x32xf32> to vector<16xf32>
    %242 = vector.shape_cast %241 : vector<16xf32> to vector<16x1xf32>
    %cst_79 = arith.constant 3.200000e+01 : f32
    %243 = vector.broadcast %cst_79 : f32 to vector<16x1xf32>
    %244 = arith.divf %242, %243 : vector<16x1xf32>
    %245 = vector.broadcast %244 : vector<16x1xf32> to vector<16x32xf32>
    %246 = arith.subf %240, %245 : vector<16x32xf32>
    %247 = arith.mulf %246, %246 : vector<16x32xf32>
    %cst_80 = arith.constant dense<0.000000e+00> : vector<16xf32>
    %248 = vector.multi_reduction <add>, %247, %cst_80 [1] : vector<16x32xf32> to vector<16xf32>
    %249 = vector.shape_cast %248 : vector<16xf32> to vector<16x1xf32>
    %cst_81 = arith.constant 0.0322580636 : f32
    %250 = vector.broadcast %cst_81 : f32 to vector<16x1xf32>
    %251 = arith.mulf %249, %250 : vector<16x1xf32>
    %252 = math.sqrt %251 : vector<16x1xf32>
    %253 = vector.broadcast %8 : vector<1x32xf32> to vector<16x32xf32>
    %254 = arith.mulf %253, %246 : vector<16x32xf32>
    %cst_82 = arith.constant 9.99999997E-7 : f32
    %255 = vector.broadcast %cst_82 : f32 to vector<16x1xf32>
    %256 = arith.addf %252, %255 : vector<16x1xf32>
    %257 = tpu.reciprocal %256 {approx = true} : vector<16x1xf32> -> vector<16x1xf32>
    %258 = vector.broadcast %257 : vector<16x1xf32> to vector<16x32xf32>
    %259 = arith.mulf %254, %258 : vector<16x32xf32>
    %260 = vector.broadcast %9 : vector<1x32xf32> to vector<16x32xf32>
    %261 = arith.addf %259, %260 : vector<16x32xf32>
    %262 = arith.addf %147, %261 : vector<16x32xf32>
    %c0_83 = arith.constant 0 : index
    %c0_84 = arith.constant 0 : index
    %263 = vector.load %arg11[%c0_83, %c0_84] : memref<32x128xf32, #tpu.memory_space<vmem>>, vector<32x128xf32>
    %cst_85 = arith.constant dense<0.000000e+00> : vector<16x128xf32>
    %264 = tpu.matmul %262, %263, %cst_85 {dimension_numbers = #tpu.dot_dimension_numbers<[1], [0], [0], [1], [0, 0, 1, 1], [], []>} : vector<16x32xf32>, vector<32x128xf32>, vector<16x128xf32> -> vector<16x128xf32>
    %c0_86 = arith.constant 0 : index
    %c0_87 = arith.constant 0 : index
    %265 = vector.load %arg14[%c0_86, %c0_87] : memref<1x128xf32, #tpu.memory_space<vmem>>, vector<1x128xf32>
    %266 = vector.broadcast %265 : vector<1x128xf32> to vector<16x128xf32>
    %267 = arith.addf %264, %266 : vector<16x128xf32>
    %c0_88 = arith.constant 0 : index
    %c0_89 = arith.constant 0 : index
    %268 = vector.load %arg15[%c0_88, %c0_89] : memref<16x128xf32, #tpu.memory_space<vmem>>, vector<16x128xf32>
    tpu.vector_store %arg15[%c0_88, %c0_89], %267 {strides = array<i32>} : memref<16x128xf32, #tpu.memory_space<vmem>>, vector<16x128xf32>,
    return
  }
}

</mosaic_0001>

<llo_original>
// kernel: tpu_custom_call.1
$region0: #{tpu_custom_call.1}
  #allocation0 [shape = 'u32[]', space=smem, size = 0x4, offset = 0x4, fixed_abs, tag = 'smem constant byte address 0x4 - core index']
  #allocation1 [shape = 'u32[72,128]{1,0:T(1,128)}', space=vmem, size = 0x9000, scoped, tag = 'internal scratch']
  %s0 = inlined_call_operand.hbm [shape: f32[2,16,32], index: 0, kind: input, shape index: {}]
  %s1 = inlined_call_operand.hbm [shape: f32[2,8,32], index: 1, kind: input, shape index: {}]
  %s2 = inlined_call_operand.hbm [shape: f32[32,128], index: 2, kind: input, shape index: {}]
  %s3 = inlined_call_operand.hbm [shape: f32[32,128], index: 3, kind: input, shape index: {}]
  %s4 = inlined_call_operand.hbm [shape: f32[32,128], index: 4, kind: input, shape index: {}]
  %s5 = inlined_call_operand.hbm [shape: f32[64,128], index: 5, kind: input, shape index: {}]
  %s6 = inlined_call_operand.vmem [shape: f32[2,128], index: 6, kind: input, shape index: {}]
  %s7 = inlined_call_operand.hbm [shape: f32[32,32], index: 7, kind: input, shape index: {}]
  %s8 = inlined_call_operand.hbm [shape: f32[32,64], index: 8, kind: input, shape index: {}]
  %s9 = inlined_call_operand.hbm [shape: f32[64,64], index: 9, kind: input, shape index: {}]
  %s10 = inlined_call_operand.hbm [shape: f32[32,32], index: 10, kind: input, shape index: {}]
  %s11 = inlined_call_operand.hbm [shape: f32[32,128], index: 11, kind: input, shape index: {}]
  %s12 = inlined_call_operand.vmem [shape: f32[2,64], index: 12, kind: input, shape index: {}]
  %s13 = inlined_call_operand.vmem [shape: f32[4,32], index: 13, kind: input, shape index: {}]
  %s14 = inlined_call_operand.vmem [shape: f32[1,128], index: 14, kind: input, shape index: {}]
  %s15 = inlined_call_operand.hbm [shape: f32[16,128], index: 15, kind: output, shape index: {}]
  %s16 = sld [smem:[#allocation0]]
  $region114: #{tpu_custom_call.1} parent=0
    _
  %s18 = ssub.s32 1, %s16
  %s19 = scalar_select 0, %s18, %s16
  $region1: #{tpu_custom_call.1} parent=0
    #allocation2 [shape = 'u8[16384]{0}', space=vmem, size = 0x4000, scoped, tag = 'input window, operand 0, single buffered']
    #allocation3 [shape = 's32[1]{0}', space=sflag, size = 0x4, scoped, tag = 'scoped memory for tpu_custom_call.1']
    #allocation4 [shape = 's32[1]{0}', space=sflag, size = 0x4, scoped, tag = 'scoped memory for tpu_custom_call.1']
    #allocation5 [shape = 'u8[8192]{0}', space=vmem, size = 0x2000, scoped, tag = 'input window, operand 1, single buffered']
    #allocation6 [shape = 's32[1]{0}', space=sflag, size = 0x4, scoped, tag = 'scoped memory for tpu_custom_call.1']
    #allocation7 [shape = 'u8[16384]{0}', space=vmem, size = 0x4000, scoped, tag = 'input window, operand 2, single buffered']
    #allocation8 [shape = 'u8[16384]{0}', space=vmem, size = 0x4000, scoped, tag = 'input window, operand 3, single buffered']
    #allocation9 [shape = 's32[1]{0}', space=sflag, size = 0x4, scoped, tag = 'scoped memory for tpu_custom_call.1']
    #allocation10 [shape = 'u8[16384]{0}', space=vmem, size = 0x4000, scoped, tag = 'input window, operand 4, single buffered']
    #allocation11 [shape = 'u8[32768]{0}', space=vmem, size = 0x8000, scoped, tag = 'input window, operand 5, single buffered']
    #allocation12 [shape = 's32[1]{0}', space=sflag, size = 0x4, scoped, tag = 'scoped memory for tpu_custom_call.1']
    #allocation13 [shape = 'u8[16384]{0}', space=vmem, size = 0x4000, scoped, tag = 'input window, operand 7, single buffered']
    #allocation14 [shape = 'u8[16384]{0}', space=vmem, size = 0x4000, scoped, tag = 'input window, operand 8, single buffered']
    #allocation15 [shape = 's32[1]{0}', space=sflag, size = 0x4, scoped, tag = 'scoped memory for tpu_custom_call.1']
    #allocation16 [shape = 'u8[32768]{0}', space=vmem, size = 0x8000, scoped, tag = 'input window, operand 9, single buffered']
    #allocation17 [shape = 'u8[16384]{0}', space=vmem, size = 0x4000, scoped, tag = 'input window, operand 10, single buffered']
    #allocation18 [shape = 's32[1]{0}', space=sflag, size = 0x4, scoped, tag = 'scoped memory for tpu_custom_call.1']
    #allocation19 [shape = 'u8[16384]{0}', space=vmem, size = 0x4000, scoped, tag = 'input window, operand 11, single buffered']
    #allocation20 [shape = 'u8[8192]{0}', space=vmem, size = 0x2000, scoped, tag = 'output window, operand 0, single buffered']
    %20 = vsyncpa [#allocation3], 0
    %21 = vsyncpa [#allocation6], 0
    %22 = vsyncpa [#allocation9], 0
    %23 = vsyncpa [#allocation12], 0
    %24 = vsyncpa [#allocation15], 0
    %25 = vsyncpa [#allocation18], 0
    %26 = vsyncpa [#allocation4], 0
    // Predicated region
    $region2: #{tpu_custom_call.1} parent=1 // pred_check
      _
    $region3: #{tpu_custom_call.1} parent=1 // pred_check_branch
      %28 = sbr.rel (0) target = $region5
    $region4: #{tpu_custom_call.1} parent=1 // pred_region
      %30 = vsyncadd [#allocation3], 0
      %s31 = sshll.u32 %s0, 4
      %s32 = int_to_ptr.hbm [resolvable:$true] %s31
      %s33 = sshll.u32 [#allocation2], 4
      %s34 = int_to_ptr.vmem [resolvable:$true] %s33
      %39 = dma.hbm_to_vmem [thread:$0]  %s32, 512, %s34, [#allocation3], 128, 128, 8
    $region5: #{tpu_custom_call.1} parent=1 // pred_fallthru
      _
    // Predicated region
    $region6: #{tpu_custom_call.1} parent=1 // pred_check
      _
    $region7: #{tpu_custom_call.1} parent=1 // pred_check_branch
      %41 = sbr.rel (0) target = $region9
    $region8: #{tpu_custom_call.1} parent=1 // pred_region
      %43 = vsyncadd [#allocation6], 0
      %s44 = sshll.u32 %s1, 4
      %s45 = int_to_ptr.hbm [resolvable:$true] %s44
      %s46 = sshll.u32 [#allocation5], 4
      %s47 = int_to_ptr.vmem [resolvable:$true] %s46
      %52 = dma.hbm_to_vmem [thread:$0]  %s45, 256, %s47, [#allocation6], 128, 128, 8
    $region9: #{tpu_custom_call.1} parent=1 // pred_fallthru
      _
    // Predicated region
    $region10: #{tpu_custom_call.1} parent=1 // pred_check
      _
    $region11: #{tpu_custom_call.1} parent=1 // pred_check_branch
      %54 = sbr.rel (0) target = $region13
    $region12: #{tpu_custom_call.1} parent=1 // pred_region
      %56 = vsyncadd [#allocation6], 0
      %s57 = sshll.u32 %s2, 4
      %s58 = int_to_ptr.hbm [resolvable:$true] %s57
      %s59 = sshll.u32 [#allocation7], 4
      %s60 = int_to_ptr.vmem [resolvable:$true] %s59
      %65 = dma.hbm_to_vmem [thread:$0]  %s58, 512, %s60, [#allocation6], 128, 128, 8
    $region13: #{tpu_custom_call.1} parent=1 // pred_fallthru
      _
    // Predicated region
    $region14: #{tpu_custom_call.1} parent=1 // pred_check
      _
    $region15: #{tpu_custom_call.1} parent=1 // pred_check_branch
      %67 = sbr.rel (0) target = $region17
    $region16: #{tpu_custom_call.1} parent=1 // pred_region
      %69 = vsyncadd [#allocation9], 0
      %s70 = sshll.u32 %s3, 4
      %s71 = int_to_ptr.hbm [resolvable:$true] %s70
      %s72 = sshll.u32 [#allocation8], 4
      %s73 = int_to_ptr.vmem [resolvable:$true] %s72
      %78 = dma.hbm_to_vmem [thread:$0]  %s71, 512, %s73, [#allocation9], 128, 128, 8
    $region17: #{tpu_custom_call.1} parent=1 // pred_fallthru
      _
    // Predicated region
    $region18: #{tpu_custom_call.1} parent=1 // pred_check
      _
    $region19: #{tpu_custom_call.1} parent=1 // pred_check_branch
      %80 = sbr.rel (0) target = $region21
    $region20: #{tpu_custom_call.1} parent=1 // pred_region
      %82 = vsyncadd [#allocation9], 0
      %s83 = sshll.u32 %s4, 4
      %s84 = int_to_ptr.hbm [resolvable:$true] %s83
      %s85 = sshll.u32 [#allocation10], 4
      %s86 = int_to_ptr.vmem [resolvable:$true] %s85
      %91 = dma.hbm_to_vmem [thread:$0]  %s84, 512, %s86, [#allocation9], 128, 128, 8
    $region21: #{tpu_custom_call.1} parent=1 // pred_fallthru
      _
    // Predicated region
    $region22: #{tpu_custom_call.1} parent=1 // pred_check
      _
    $region23: #{tpu_custom_call.1} parent=1 // pred_check_branch
      %93 = sbr.rel (0) target = $region25
    $region24: #{tpu_custom_call.1} parent=1 // pred_region
      %95 = vsyncadd [#allocation12], 0
      %s96 = sshll.u32 %s5, 4
      %s97 = int_to_ptr.hbm [resolvable:$true] %s96
      %s98 = sshll.u32 [#allocation11], 4
      %s99 = int_to_ptr.vmem [resolvable:$true] %s98
      %104 = dma.hbm_to_vmem [thread:$0]  %s97, 1024, %s99, [#allocation12], 128, 128, 8
    $region25: #{tpu_custom_call.1} parent=1 // pred_fallthru
      _
    // Predicated region
    $region26: #{tpu_custom_call.1} parent=1 // pred_check
      _
    $region27: #{tpu_custom_call.1} parent=1 // pred_check_branch
      %106 = sbr.rel (0) target = $region29
    $region28: #{tpu_custom_call.1} parent=1 // pred_region
      _
    $region29: #{tpu_custom_call.1} parent=1 // pred_fallthru
      _
    // Predicated region
    $region30: #{tpu_custom_call.1} parent=1 // pred_check
      _
    $region31: #{tpu_custom_call.1} parent=1 // pred_check_branch
      %108 = sbr.rel (0) target = $region33
    $region32: #{tpu_custom_call.1} parent=1 // pred_region
      %110 = vsyncadd [#allocation12], 0
      %s111 = sshll.u32 %s7, 4
      %s112 = int_to_ptr.hbm [resolvable:$true] %s111
      %s113 = sshll.u32 [#allocation13], 4
      %s114 = int_to_ptr.vmem [resolvable:$true] %s113
      %119 = dma.hbm_to_vmem [thread:$0]  %s112, 512, %s114, [#allocation12], 128, 128, 8
    $region33: #{tpu_custom_call.1} parent=1 // pred_fallthru
      _
    // Predicated region
    $region34: #{tpu_custom_call.1} parent=1 // pred_check
      _
    $region35: #{tpu_custom_call.1} parent=1 // pred_check_branch
      %121 = sbr.rel (0) target = $region37
    $region36: #{tpu_custom_call.1} parent=1 // pred_region
      %123 = vsyncadd [#allocation15], 0
      %s124 = sshll.u32 %s8, 4
      %s125 = int_to_ptr.hbm [resolvable:$true] %s124
      %s126 = sshll.u32 [#allocation14], 4
      %s127 = int_to_ptr.vmem [resolvable:$true] %s126
      %132 = dma.hbm_to_vmem [thread:$0]  %s125, 512, %s127, [#allocation15], 128, 128, 8
    $region37: #{tpu_custom_call.1} parent=1 // pred_fallthru
      _
    // Predicated region
    $region38: #{tpu_custom_call.1} parent=1 // pred_check
      _
    $region39: #{tpu_custom_call.1} parent=1 // pred_check_branch
      %134 = sbr.rel (0) target = $region41
    $region40: #{tpu_custom_call.1} parent=1 // pred_region
      %136 = vsyncadd [#allocation15], 0
      %s137 = sshll.u32 %s9, 4
      %s138 = int_to_ptr.hbm [resolvable:$true] %s137
      %s139 = sshll.u32 [#allocation16], 4
      %s140 = int_to_ptr.vmem [resolvable:$true] %s139
      %145 = dma.hbm_to_vmem [thread:$0]  %s138, 1024, %s140, [#allocation15], 128, 128, 8
    $region41: #{tpu_custom_call.1} parent=1 // pred_fallthru
      _
    // Predicated region
    $region42: #{tpu_custom_call.1} parent=1 // pred_check
      _
    $region43: #{tpu_custom_call.1} parent=1 // pred_check_branch
      %147 = sbr.rel (0) target = $region45
    $region44: #{tpu_custom_call.1} parent=1 // pred_region
      %149 = vsyncadd [#allocation18], 0
      %s150 = sshll.u32 %s10, 4
      %s151 = int_to_ptr.hbm [resolvable:$true] %s150
      %s152 = sshll.u32 [#allocation17], 4
      %s153 = int_to_ptr.vmem [resolvable:$true] %s152
      %158 = dma.hbm_to_vmem [thread:$0]  %s151, 512, %s153, [#allocation18], 128, 128, 8
    $region45: #{tpu_custom_call.1} parent=1 // pred_fallthru
      _
    // Predicated region
    $region46: #{tpu_custom_call.1} parent=1 // pred_check
      _
    $region47: #{tpu_custom_call.1} parent=1 // pred_check_branch
      %160 = sbr.rel (0) target = $region49
    $region48: #{tpu_custom_call.1} parent=1 // pred_region
      %162 = vsyncadd [#allocation18], 0
      %s163 = sshll.u32 %s11, 4
      %s164 = int_to_ptr.hbm [resolvable:$true] %s163
      %s165 = sshll.u32 [#allocation19], 4
      %s166 = int_to_ptr.vmem [resolvable:$true] %s165
      %171 = dma.hbm_to_vmem [thread:$0]  %s164, 512, %s166, [#allocation18], 128, 128, 8
    $region49: #{tpu_custom_call.1} parent=1 // pred_fallthru
      _
    // Predicated region
    $region50: #{tpu_custom_call.1} parent=1 // pred_check
      _
    $region51: #{tpu_custom_call.1} parent=1 // pred_check_branch
      %173 = sbr.rel (0) target = $region53
    $region52: #{tpu_custom_call.1} parent=1 // pred_region
      _
    $region53: #{tpu_custom_call.1} parent=1 // pred_fallthru
      _
    // Predicated region
    $region54: #{tpu_custom_call.1} parent=1 // pred_check
      _
    $region55: #{tpu_custom_call.1} parent=1 // pred_check_branch
      %175 = sbr.rel (0) target = $region57
    $region56: #{tpu_custom_call.1} parent=1 // pred_region
      _
    $region57: #{tpu_custom_call.1} parent=1 // pred_fallthru
      _
    // Predicated region
    $region58: #{tpu_custom_call.1} parent=1 // pred_check
      _
    $region59: #{tpu_custom_call.1} parent=1 // pred_check_branch
      %177 = sbr.rel (0) target = $region61
    $region60: #{tpu_custom_call.1} parent=1 // pred_region
      _
    $region61: #{tpu_custom_call.1} parent=1 // pred_fallthru
      _
    // Predicated region
    $region62: #{tpu_custom_call.1} parent=1 // pred_check
      _
    $region63: #{tpu_custom_call.1} parent=1 // pred_check_branch
      %179 = sbr.rel (0) target = $region65
    $region64: #{tpu_custom_call.1} parent=1 // pred_region
      %181 = dma.done [#allocation3], 512
    $region65: #{tpu_custom_call.1} parent=1 // pred_fallthru
      _
    // Predicated region
    $region66: #{tpu_custom_call.1} parent=1 // pred_check
      _
    $region67: #{tpu_custom_call.1} parent=1 // pred_check_branch
      %183 = sbr.rel (0) target = $region69
    $region68: #{tpu_custom_call.1} parent=1 // pred_region
      %185 = dma.done [#allocation6], 256
    $region69: #{tpu_custom_call.1} parent=1 // pred_fallthru
      _
    // Predicated region
    $region70: #{tpu_custom_call.1} parent=1 // pred_check
      _
    $region71: #{tpu_custom_call.1} parent=1 // pred_check_branch
      %187 = sbr.rel (0) target = $region73
    $region72: #{tpu_custom_call.1} parent=1 // pred_region
      %189 = dma.done [#allocation6], 512
    $region73: #{tpu_custom_call.1} parent=1 // pred_fallthru
      _
    // Predicated region
    $region74: #{tpu_custom_call.1} parent=1 // pred_check
      _
    $region75: #{tpu_custom_call.1} parent=1 // pred_check_branch
      %191 = sbr.rel (0) target = $region77
    $region76: #{tpu_custom_call.1} parent=1 // pred_region
      %193 = dma.done [#allocation9], 512
    $region77: #{tpu_custom_call.1} parent=1 // pred_fallthru
      _
    // Predicated region
    $region78: #{tpu_custom_call.1} parent=1 // pred_check
      _
    $region79: #{tpu_custom_call.1} parent=1 // pred_check_branch
      %195 = sbr.rel (0) target = $region81
    $region80: #{tpu_custom_call.1} parent=1 // pred_region
      %197 = dma.done [#allocation9], 512
    $region81: #{tpu_custom_call.1} parent=1 // pred_fallthru
      _
    // Predicated region
    $region82: #{tpu_custom_call.1} parent=1 // pred_check
      _
    $region83: #{tpu_custom_call.1} parent=1 // pred_check_branch
      %199 = sbr.rel (0) target = $region85
    $region84: #{tpu_custom_call.1} parent=1 // pred_region
      %201 = dma.done [#allocation12], 1024
    $region85: #{tpu_custom_call.1} parent=1 // pred_fallthru
      _
    // Predicated region
    $region86: #{tpu_custom_call.1} parent=1 // pred_check
      _
    $region87: #{tpu_custom_call.1} parent=1 // pred_check_branch
      %203 = sbr.rel (0) target = $region89
    $region88: #{tpu_custom_call.1} parent=1 // pred_region
      %205 = dma.done [#allocation12], 512
    $region89: #{tpu_custom_call.1} parent=1 // pred_fallthru
      _
    // Predicated region
    $region90: #{tpu_custom_call.1} parent=1 // pred_check
      _
    $region91: #{tpu_custom_call.1} parent=1 // pred_check_branch
      %207 = sbr.rel (0) target = $region93
    $region92: #{tpu_custom_call.1} parent=1 // pred_region
      %209 = dma.done [#allocation15], 512
    $region93: #{tpu_custom_call.1} parent=1 // pred_fallthru
      _
    // Predicated region
    $region94: #{tpu_custom_call.1} parent=1 // pred_check
      _
    $region95: #{tpu_custom_call.1} parent=1 // pred_check_branch
      %211 = sbr.rel (0) target = $region97
    $region96: #{tpu_custom_call.1} parent=1 // pred_region
      %213 = dma.done [#allocation15], 1024
    $region97: #{tpu_custom_call.1} parent=1 // pred_fallthru
      _
    // Predicated region
    $region98: #{tpu_custom_call.1} parent=1 // pred_check
      _
    $region99: #{tpu_custom_call.1} parent=1 // pred_check_branch
      %215 = sbr.rel (0) target = $region101
    $region100: #{tpu_custom_call.1} parent=1 // pred_region
      %217 = dma.done [#allocation18], 512
    $region101: #{tpu_custom_call.1} parent=1 // pred_fallthru
      _
    // Predicated region
    $region102: #{tpu_custom_call.1} parent=1 // pred_check
      _
    $region103: #{tpu_custom_call.1} parent=1 // pred_check_branch
      %219 = sbr.rel (0) target = $region105
    $region104: #{tpu_custom_call.1} parent=1 // pred_region
      %221 = dma.done [#allocation18], 512
    $region105: #{tpu_custom_call.1} parent=1 // pred_fallthru
      _
    %v222 = vld [vmem:[#allocation2] sm:$0xff]
    %v223 = vld [vmem:[#allocation2 + $0x8] sm:$0xff]
    %v224 = vld [vmem:[#allocation2 + $0x10] sm:$0xff]
    %v225 = vld [vmem:[#allocation2 + $0x18] sm:$0xff]
    %v226 = vld [vmem:[#allocation5] sm:$0xff]
    %v227 = vld [vmem:[#allocation5 + $0x8] sm:$0xff]
    %v228 = vld [vmem:[%s6] sm:$0x1]
    %v229 = vld [vmem:[%s6 + $0x1] sm:$0x1]
    %v230 = vld [vmem:[%s12] sm:$0x1]
    %v231 = vld [vmem:[%s12 + $0x1] sm:$0x1]
    %v232 = vld [vmem:[%s13] sm:$0x1]
    %v233 = vld [vmem:[%s13 + $0x1] sm:$0x1]
    %v234 = vld [vmem:[%s13 + $0x2] sm:$0x1]
    %v235 = vld [vmem:[%s13 + $0x3] sm:$0x1]
    %vm236 = vcmask 261120
    %v237 = vsel %vm236, %v222, 0.0
    %v238 = vsel %vm236, %v223, 0.0
    %v239 = vadd.f32 %v237, %v238
    %v240 = vrot.slane %v239, 4
    %v241 = vadd.f32 %v239, %v240
    %v242 = vrot.slane %v241, 2
    %v243 = vadd.f32 %v241, %v242
    %v244 = vrot.slane %v243, 1
    %v245 = vadd.f32 %v243, %v244
    %v246 = vsel %vm236, %v224, 0.0
    %v247 = vsel %vm236, %v225, 0.0
    %v248 = vadd.f32 %v246, %v247
    %v249 = vrot.slane %v248, 4
    %v250 = vadd.f32 %v248, %v249
    %v251 = vrot.slane %v250, 2
    %v252 = vadd.f32 %v250, %v251
    %v253 = vrot.slane %v252, 1
    %v254 = vadd.f32 %v252, %v253
    %v255 = vrcp.pop 16.0
    %v256 = vmul.f32 16.0, %v255
    %v257 = vsub.f32 1.0, %v256
    %v258 = vmul.f32 %v255, %v257
    %v259 = vadd.f32 %v255, %v258
    %vm260 = vweird.f32 %v255
    %v261 = vsel %vm260, %v255, %v259
    %v262 = vmul.f32 %v245, %v261
    %v263 = vmul.f32 %v254, %v261
    %v264 = vld [vmem:[#allocation8] sm:$0xff]
    %v265 = vld [vmem:[#allocation8 + $0x8] sm:$0xff]
    %v266 = vld [vmem:[#allocation8 + $0x10] sm:$0xff]
    %v267 = vld [vmem:[#allocation8 + $0x18] sm:$0xff]
    %v269 = vsel %vm236, %v226, 0
    %v272 = vsel %vm236, %v227, 0
    %274 = vmatpush.msra.mxu0 0.0
    %275 = vmatpush.msra.mxu0 0.0
    %276 = vmatpush.msra.mxu0 0.0
    %277 = vmatpush.msra.mxu0 0.0
    %278 = vmatpush.msra.mxu0 0.0
    %279 = vmatpush.msra.mxu0 0.0
    %280 = vmatpush.msra.mxu0 0.0
    %281 = vmatpush.msra.mxu0 0.0
    %282 = vmatpush.msra.mxu0 0.0
    %283 = vmatpush.msra.mxu0 0.0
    %284 = vmatpush.msra.mxu0 0.0
    %285 = vmatpush.msra.mxu0 0.0
    %286 = vmatpush.msra.mxu0 %v267
    %287 = vmatpush.msra.mxu0 %v266
    %288 = vmatpush.msra.mxu0 %v265
    %289 = vmatpush.msra.mxu0 %v264
    %290 = vmatmul.f32.gmra.mxu0 %v269
    %v291 = vpop.f32.mrf.mxu0
    %v292 = vadd.f32 0.0, %v291
    %293 = vmatmul.f32.gmra.mxu0 %v272
    %v294 = vpop.f32.mrf.mxu0
    %v295 = vadd.f32 0.0, %v294
    %296 = vdwg.mxu0
    %v297 = vld [vmem:[#allocation7] sm:$0xff]
    %v298 = vld [vmem:[#allocation7 + $0x8] sm:$0xff]
    %v299 = vld [vmem:[#allocation7 + $0x10] sm:$0xff]
    %v300 = vld [vmem:[#allocation7 + $0x18] sm:$0xff]
    %vm303 = vcmask 1041409
    %v304 = vsel %vm303, %v263, %v262
    %v305 = vsel %vm236, %v304, 0
    %307 = vmatpush.msra.mxu0 0.0
    %308 = vmatpush.msra.mxu0 0.0
    %309 = vmatpush.msra.mxu0 0.0
    %310 = vmatpush.msra.mxu0 0.0
    %311 = vmatpush.msra.mxu0 0.0
    %312 = vmatpush.msra.mxu0 0.0
    %313 = vmatpush.msra.mxu0 0.0
    %314 = vmatpush.msra.mxu0 0.0
    %315 = vmatpush.msra.mxu0 0.0
    %316 = vmatpush.msra.mxu0 0.0
    %317 = vmatpush.msra.mxu0 0.0
    %318 = vmatpush.msra.mxu0 0.0
    %319 = vmatpush.msra.mxu0 %v300
    %320 = vmatpush.msra.mxu0 %v299
    %321 = vmatpush.msra.mxu0 %v298
    %322 = vmatpush.msra.mxu0 %v297
    %323 = vmatmul.f32.gmra.mxu0 %v305
    %v324 = vpop.f32.mrf.mxu0
    %v325 = vadd.f32 0.0, %v324
    %326 = vdwg.mxu0
    %v328 = vrot.slane %v325, 1
    %v329 = vperm.slane %v325, 0
    %v330 = vperm.slane %v328, 0
    %v333 = vadd.f32 %v292, %v329
    %v334 = vadd.f32 %v295, %v330
    %v335 = vperm.slane %v228, 0
    %v336 = vadd.f32 %v333, %v335
    %v337 = vadd.f32 %v334, %v335
    %v338 = vld [vmem:[#allocation10] sm:$0xff]
    %v339 = vld [vmem:[#allocation10 + $0x8] sm:$0xff]
    %v340 = vld [vmem:[#allocation10 + $0x10] sm:$0xff]
    %v341 = vld [vmem:[#allocation10 + $0x18] sm:$0xff]
    %v342 = vld [vmem:[#allocation11] sm:$0xff]
    %v343 = vld [vmem:[#allocation11 + $0x8] sm:$0xff]
    %v344 = vld [vmem:[#allocation11 + $0x10] sm:$0xff]
    %v345 = vld [vmem:[#allocation11 + $0x18] sm:$0xff]
    %v346 = vld [vmem:[#allocation11 + $0x20] sm:$0xff]
    %v347 = vld [vmem:[#allocation11 + $0x28] sm:$0xff]
    %v348 = vld [vmem:[#allocation11 + $0x30] sm:$0xff]
    %v349 = vld [vmem:[#allocation11 + $0x38] sm:$0xff]
    %v350 = vperm.slane %v229, 0
    %v352 = vsel %vm236, 0.0, 0
    %354 = vmatpush.msra.mxu0 0.0
    %355 = vmatpush.msra.mxu0 0.0
    %356 = vmatpush.msra.mxu0 0.0
    %357 = vmatpush.msra.mxu0 0.0
    %358 = vmatpush.msra.mxu0 0.0
    %359 = vmatpush.msra.mxu0 0.0
    %360 = vmatpush.msra.mxu0 0.0
    %361 = vmatpush.msra.mxu0 0.0
    %362 = vmatpush.msra.mxu0 0.0
    %363 = vmatpush.msra.mxu0 0.0
    %364 = vmatpush.msra.mxu0 0.0
    %365 = vmatpush.msra.mxu0 0.0
    %366 = vmatpush.msra.mxu0 %v341
    %367 = vmatpush.msra.mxu0 %v340
    %368 = vmatpush.msra.mxu0 %v339
    %369 = vmatpush.msra.mxu0 %v338
    %370 = vmatmul.f32.gmra.mxu0 %v352
    %v371 = vpop.f32.mrf.mxu0
    %v372 = vadd.f32 0.0, %v371
    %373 = vdwg.mxu0
    %v374 = vadd.f32 %v336, %v372
    %v375 = vxor.u32 %v374, 2147483648
    %v376 = vmul.f32 %v375, 1.442695
    %v377 = vpow.pop %v376
    %v378 = vadd.f32 %v377, 1.0
    %v379 = vrcp.pop %v378
    %v380 = vmul.f32 %v378, %v379
    %v381 = vsub.f32 1.0, %v380
    %v382 = vmul.f32 %v379, %v381
    %v383 = vadd.f32 %v379, %v382
    %vm384 = vweird.f32 %v378
    %vm385 = vweird.f32 %v379
    %vm386 = vmor %vm384, %vm385
    %v387 = vsel %vm386, %v379, %v383
    %v388 = vand.u32 2147483647, %v378
    %vm389 = vcmp.eq.f32.partialorder %v388, 8.507059e+37
    %v390 = vand.u32 %v378, 2147483648
    %v391 = vor.u32 1.1754944e-38, %v390
    %v392 = vsel %vm389, %v391, %v387
    %v393 = vmul.f32 1.0, %v392
    %v394 = vtanh.pop %v374
    %v395 = vmul.f32 %v393, 0.0
    %397 = vrot.lane.b32.xlu0 %v394, 64
    %v398 = vpop.permute.xlu0 %397
    %v400 = vmul.f32 %v393, %v398
    %402 = vrot.lane.b32.xlu0 %v400, 32
    %v403 = vpop.permute.xlu0 %402
    %v405 = vadd.f32 %v395, %v403
    %v406 = vtanh.pop %v405
    %408 = vrot.lane.b32.xlu0 %v406, 64
    %v409 = vpop.permute.xlu0 %408
    %v411 = vmul.f32 %v393, %v409
    %413 = vrot.lane.b32.xlu0 %v411, 32
    %v414 = vpop.permute.xlu0 %413
    %v416 = vsel %vm236, %v414, 0.0
    %vm417 = vcmask 523264
    %v419 = vsel %vm417, %v416, 0
    %421 = vmatpush.msra.mxu0 0.0
    %422 = vmatpush.msra.mxu0 0.0
    %423 = vmatpush.msra.mxu0 0.0
    %424 = vmatpush.msra.mxu0 0.0
    %425 = vmatpush.msra.mxu0 0.0
    %426 = vmatpush.msra.mxu0 0.0
    %427 = vmatpush.msra.mxu0 0.0
    %428 = vmatpush.msra.mxu0 0.0
    %429 = vmatpush.msra.mxu0 %v349
    %430 = vmatpush.msra.mxu0 %v348
    %431 = vmatpush.msra.mxu0 %v347
    %432 = vmatpush.msra.mxu0 %v346
    %433 = vmatpush.msra.mxu0 %v345
    %434 = vmatpush.msra.mxu0 %v344
    %435 = vmatpush.msra.mxu0 %v343
    %436 = vmatpush.msra.mxu0 %v342
    %437 = vmatmul.f32.gmra.mxu0 %v419
    %v438 = vpop.f32.mrf.mxu0
    %v439 = vadd.f32 %v350, %v438
    %440 = vdwg.mxu0
    %v441 = vxor.u32 %v439, 2147483648
    %v442 = vmul.f32 %v441, 1.442695
    %v443 = vpow.pop %v442
    %v444 = vadd.f32 %v443, 1.0
    %v445 = vrcp.pop %v444
    %v446 = vmul.f32 %v444, %v445
    %v447 = vsub.f32 1.0, %v446
    %v448 = vmul.f32 %v445, %v447
    %v449 = vadd.f32 %v445, %v448
    %vm450 = vweird.f32 %v444
    %vm451 = vweird.f32 %v445
    %vm452 = vmor %vm450, %vm451
    %v453 = vsel %vm452, %v445, %v449
    %v454 = vand.u32 2147483647, %v444
    %vm455 = vcmp.eq.f32.partialorder %v454, 8.507059e+37
    %v456 = vand.u32 %v444, 2147483648
    %v457 = vor.u32 1.1754944e-38, %v456
    %v458 = vsel %vm455, %v457, %v453
    %v459 = vmul.f32 1.0, %v458
    %v460 = vtanh.pop %v439
    %v461 = vmul.f32 %v459, 0.0
    %463 = vrot.lane.b32.xlu0 %v460, 64
    %v464 = vpop.permute.xlu0 %463
    %v466 = vmul.f32 %v459, %v464
    %468 = vrot.lane.b32.xlu0 %v466, 32
    %v469 = vpop.permute.xlu0 %468
    %v471 = vadd.f32 %v461, %v469
    %v472 = vtanh.pop %v471
    %474 = vrot.lane.b32.xlu0 %v472, 64
    %v475 = vpop.permute.xlu0 %474
    %v477 = vmul.f32 %v459, %v475
    %v478 = vsel %vm236, %v414, 0
    %480 = vmatpush.msra.mxu0 0.0
    %481 = vmatpush.msra.mxu0 0.0
    %482 = vmatpush.msra.mxu0 0.0
    %483 = vmatpush.msra.mxu0 0.0
    %484 = vmatpush.msra.mxu0 0.0
    %485 = vmatpush.msra.mxu0 0.0
    %486 = vmatpush.msra.mxu0 0.0
    %487 = vmatpush.msra.mxu0 0.0
    %488 = vmatpush.msra.mxu0 0.0
    %489 = vmatpush.msra.mxu0 0.0
    %490 = vmatpush.msra.mxu0 0.0
    %491 = vmatpush.msra.mxu0 0.0
    %492 = vmatpush.msra.mxu0 %v341
    %493 = vmatpush.msra.mxu0 %v340
    %494 = vmatpush.msra.mxu0 %v339
    %495 = vmatpush.msra.mxu0 %v338
    %496 = vmatmul.f32.gmra.mxu0 %v478
    %v497 = vpop.f32.mrf.mxu0
    %v498 = vadd.f32 0.0, %v497
    %499 = vdwg.mxu0
    %v500 = vadd.f32 %v337, %v498
    %v501 = vxor.u32 %v500, 2147483648
    %v502 = vmul.f32 %v501, 1.442695
    %v503 = vpow.pop %v502
    %v504 = vadd.f32 %v503, 1.0
    %v505 = vrcp.pop %v504
    %v506 = vmul.f32 %v504, %v505
    %v507 = vsub.f32 1.0, %v506
    %v508 = vmul.f32 %v505, %v507
    %v509 = vadd.f32 %v505, %v508
    %vm510 = vweird.f32 %v504
    %vm511 = vweird.f32 %v505
    %vm512 = vmor %vm510, %vm511
    %v513 = vsel %vm512, %v505, %v509
    %v514 = vand.u32 2147483647, %v504
    %vm515 = vcmp.eq.f32.partialorder %v514, 8.507059e+37
    %v516 = vand.u32 %v504, 2147483648
    %v517 = vor.u32 1.1754944e-38, %v516
    %v518 = vsel %vm515, %v517, %v513
    %v519 = vmul.f32 1.0, %v518
    %v520 = vtanh.pop %v500
    %v521 = vmul.f32 %v519, %v405
    %523 = vrot.lane.b32.xlu0 %v520, 64
    %v524 = vpop.permute.xlu0 %523
    %v526 = vmul.f32 %v519, %v524
    %528 = vrot.lane.b32.xlu0 %v526, 32
    %v529 = vpop.permute.xlu0 %528
    %v531 = vadd.f32 %v521, %v529
    %v532 = vtanh.pop %v531
    %534 = vrot.lane.b32.xlu0 %v532, 64
    %v535 = vpop.permute.xlu0 %534
    %v537 = vmul.f32 %v519, %v535
    %539 = vrot.lane.b32.xlu0 %v537, 32
    %v540 = vpop.permute.xlu0 %539
    %543 = vrot.lane.b32.xlu0 %v477, 64
    %v544 = vpop.permute.xlu0 %543
    %v546 = vsel %vm236, %v540, %v544
    %v548 = vsel %vm417, %v546, 0
    %550 = vmatpush.msra.mxu0 0.0
    %551 = vmatpush.msra.mxu0 0.0
    %552 = vmatpush.msra.mxu0 0.0
    %553 = vmatpush.msra.mxu0 0.0
    %554 = vmatpush.msra.mxu0 0.0
    %555 = vmatpush.msra.mxu0 0.0
    %556 = vmatpush.msra.mxu0 0.0
    %557 = vmatpush.msra.mxu0 0.0
    %558 = vmatpush.msra.mxu0 %v349
    %559 = vmatpush.msra.mxu0 %v348
    %560 = vmatpush.msra.mxu0 %v347
    %561 = vmatpush.msra.mxu0 %v346
    %562 = vmatpush.msra.mxu0 %v345
    %563 = vmatpush.msra.mxu0 %v344
    %564 = vmatpush.msra.mxu0 %v343
    %565 = vmatpush.msra.mxu0 %v342
    %566 = vmatmul.f32.gmra.mxu0 %v548
    %v567 = vpop.f32.mrf.mxu0
    %v568 = vadd.f32 %v350, %v567
    %569 = vdwg.mxu0
    %v570 = vxor.u32 %v568, 2147483648
    %v571 = vmul.f32 %v570, 1.442695
    %v572 = vpow.pop %v571
    %v573 = vadd.f32 %v572, 1.0
    %v574 = vrcp.pop %v573
    %v575 = vmul.f32 %v573, %v574
    %v576 = vsub.f32 1.0, %v575
    %v577 = vmul.f32 %v574, %v576
    %v578 = vadd.f32 %v574, %v577
    %vm579 = vweird.f32 %v573
    %vm580 = vweird.f32 %v574
    %vm581 = vmor %vm579, %vm580
    %v582 = vsel %vm581, %v574, %v578
    %v583 = vand.u32 2147483647, %v573
    %vm584 = vcmp.eq.f32.partialorder %v583, 8.507059e+37
    %v585 = vand.u32 %v573, 2147483648
    %v586 = vor.u32 1.1754944e-38, %v585
    %v587 = vsel %vm584, %v586, %v582
    %v588 = vmul.f32 1.0, %v587
    %v589 = vtanh.pop %v568
    %v590 = vmul.f32 %v588, %v471
    %592 = vrot.lane.b32.xlu0 %v589, 64
    %v593 = vpop.permute.xlu0 %592
    %v595 = vmul.f32 %v588, %v593
    %597 = vrot.lane.b32.xlu0 %v595, 32
    %v598 = vpop.permute.xlu0 %597
    %v600 = vadd.f32 %v590, %v598
    %v601 = vtanh.pop %v600
    %603 = vrot.lane.b32.xlu0 %v601, 64
    %v604 = vpop.permute.xlu0 %603
    %v606 = vmul.f32 %v588, %v604
    %v607 = vld [vmem:[#allocation13] sm:$0xff]
    %v608 = vld [vmem:[#allocation13 + $0x8] sm:$0xff]
    %v609 = vld [vmem:[#allocation13 + $0x10] sm:$0xff]
    %v610 = vld [vmem:[#allocation13 + $0x18] sm:$0xff]
    %v611 = vperm.slane %v232, 0
    %613 = vrot.lane.b32.xlu0 %v477, 32
    %v614 = vpop.permute.xlu0 %613
    %615 = vrot.lane.b32.xlu0 %v606, 32
    %v616 = vpop.permute.xlu0 %615
    %v617 = vsel %vm236, %v614, 0
    %v619 = vsel %vm236, %v616, 0
    %621 = vmatpush.msra.mxu0 0.0
    %622 = vmatpush.msra.mxu0 0.0
    %623 = vmatpush.msra.mxu0 0.0
    %624 = vmatpush.msra.mxu0 0.0
    %625 = vmatpush.msra.mxu0 0.0
    %626 = vmatpush.msra.mxu0 0.0
    %627 = vmatpush.msra.mxu0 0.0
    %628 = vmatpush.msra.mxu0 0.0
    %629 = vmatpush.msra.mxu0 0.0
    %630 = vmatpush.msra.mxu0 0.0
    %631 = vmatpush.msra.mxu0 0.0
    %632 = vmatpush.msra.mxu0 0.0
    %633 = vmatpush.msra.mxu0 %v610
    %634 = vmatpush.msra.mxu0 %v609
    %635 = vmatpush.msra.mxu0 %v608
    %636 = vmatpush.msra.mxu0 %v607
    %637 = vmatmul.f32.gmra.mxu0 %v617
    %v638 = vpop.f32.mrf.mxu0
    %v639 = vadd.f32 %v611, %v638
    %640 = vmatmul.f32.gmra.mxu0 %v619
    %v641 = vpop.f32.mrf.mxu0
    %v642 = vadd.f32 %v611, %v641
    %643 = vdwg.mxu0
    %v644 = vld [vmem:[#allocation14] sm:$0xff]
    %v645 = vld [vmem:[#allocation14 + $0x8] sm:$0xff]
    %v646 = vld [vmem:[#allocation14 + $0x10] sm:$0xff]
    %v647 = vld [vmem:[#allocation14 + $0x18] sm:$0xff]
    %v648 = vperm.slane %v230, 0
    %v650 = vsel %vm236, %v222, 0
    %v653 = vsel %vm236, %v223, 0
    %v656 = vsel %vm236, %v224, 0
    %v659 = vsel %vm236, %v225, 0
    %661 = vmatpush.msra.mxu0 0.0
    %662 = vmatpush.msra.mxu0 0.0
    %663 = vmatpush.msra.mxu0 0.0
    %664 = vmatpush.msra.mxu0 0.0
    %665 = vmatpush.msra.mxu0 0.0
    %666 = vmatpush.msra.mxu0 0.0
    %667 = vmatpush.msra.mxu0 0.0
    %668 = vmatpush.msra.mxu0 0.0
    %669 = vmatpush.msra.mxu0 0.0
    %670 = vmatpush.msra.mxu0 0.0
    %671 = vmatpush.msra.mxu0 0.0
    %672 = vmatpush.msra.mxu0 0.0
    %673 = vmatpush.msra.mxu0 %v647
    %674 = vmatpush.msra.mxu0 %v646
    %675 = vmatpush.msra.mxu0 %v645
    %676 = vmatpush.msra.mxu0 %v644
    %677 = vmatmul.f32.gmra.mxu0 %v650
    %v678 = vpop.f32.mrf.mxu0
    %v679 = vadd.f32 %v648, %v678
    %680 = vmatmul.f32.gmra.mxu0 %v653
    %v681 = vpop.f32.mrf.mxu0
    %v682 = vadd.f32 %v648, %v681
    %683 = vmatmul.f32.gmra.mxu0 %v656
    %v684 = vpop.f32.mrf.mxu0
    %v685 = vadd.f32 %v648, %v684
    %686 = vmatmul.f32.gmra.mxu0 %v659
    %v687 = vpop.f32.mrf.mxu0
    %v688 = vadd.f32 %v648, %v687
    %689 = vdwg.mxu0
    %vm690 = vcmask 64512
    %v692 = vsel %vm690, %v639, 0
    %v695 = vsel %vm690, %v679, 0
    %v698 = vsel %vm690, %v682, 0
    %700 = vmatpush.xpose.msra.mxu0 0.0
    %701 = vmatpush.xpose.msra.mxu0 0.0
    %702 = vmatpush.xpose.msra.mxu0 0.0
    %703 = vmatpush.xpose.msra.mxu0 0.0
    %704 = vmatpush.xpose.msra.mxu0 0.0
    %705 = vmatpush.xpose.msra.mxu0 0.0
    %706 = vmatpush.xpose.msra.mxu0 0.0
    %707 = vmatpush.xpose.msra.mxu0 0.0
    %708 = vmatpush.xpose.msra.mxu0 0.0
    %709 = vmatpush.xpose.msra.mxu0 0.0
    %710 = vmatpush.xpose.msra.mxu0 0.0
    %711 = vmatpush.xpose.msra.mxu0 0.0
    %712 = vmatpush.xpose.msra.mxu0 0.0
    %713 = vmatpush.xpose.msra.mxu0 0.0
    %714 = vmatpush.xpose.msra.mxu0 %v698
    %715 = vmatpush.xpose.msra.mxu0 %v695
    %716 = vmatmul.f32.gmra.mxu0 %v692
    %v717 = vpop.f32.mrf.mxu0
    %v718 = vadd.f32 0.0, %v717
    %719 = vdwg.mxu0
    %v721 = vsel %vm690, %v642, 0
    %v724 = vsel %vm690, %v685, 0
    %v727 = vsel %vm690, %v688, 0
    %729 = vmatpush.xpose.msra.mxu0 0.0
    %730 = vmatpush.xpose.msra.mxu0 0.0
    %731 = vmatpush.xpose.msra.mxu0 0.0
    %732 = vmatpush.xpose.msra.mxu0 0.0
    %733 = vmatpush.xpose.msra.mxu0 0.0
    %734 = vmatpush.xpose.msra.mxu0 0.0
    %735 = vmatpush.xpose.msra.mxu0 0.0
    %736 = vmatpush.xpose.msra.mxu0 0.0
    %737 = vmatpush.xpose.msra.mxu0 0.0
    %738 = vmatpush.xpose.msra.mxu0 0.0
    %739 = vmatpush.xpose.msra.mxu0 0.0
    %740 = vmatpush.xpose.msra.mxu0 0.0
    %741 = vmatpush.xpose.msra.mxu0 0.0
    %742 = vmatpush.xpose.msra.mxu0 0.0
    %743 = vmatpush.xpose.msra.mxu0 %v727
    %744 = vmatpush.xpose.msra.mxu0 %v724
    %745 = vmatmul.f32.gmra.mxu0 %v721
    %v746 = vpop.f32.mrf.mxu0
    %v747 = vadd.f32 0.0, %v746
    %748 = vdwg.mxu0
    %vm749 = vcmask 130048
    %v750 = vsel %vm749, %v718, -inf
    %751 = vmax.xlane.f32.xlu0 %v750
    %v752 = vpop.xlane.xlu0 %751
    %v753 = vsel %vm749, %v747, -inf
    %754 = vmax.xlane.f32.xlu0 %v753
    %v755 = vpop.xlane.xlu0 %754
    %v756 = vsub.f32 %v718, %v752
    %v757 = vsub.f32 %v747, %v755
    %v758 = vmul.f32 %v756, 1.442695
    %v759 = vpow.pop %v758
    %v760 = vmul.f32 %v757, 1.442695
    %v761 = vpow.pop %v760
    %v762 = vsel %vm749, %v759, 0.0
    %763 = vadd.xlane.f32.xlu0 %v762
    %v764 = vpop.xlane.xlu0 %763
    %v765 = vsel %vm749, %v761, 0.0
    %766 = vadd.xlane.f32.xlu0 %v765
    %v767 = vpop.xlane.xlu0 %766
    %v768 = vrcp.pop %v764
    %v769 = vrcp.pop %v767
    %v770 = vmul.f32 %v759, %v768
    %v771 = vmul.f32 %v761, %v769
    %772 = vrot.lane.b32.xlu0 %v679, 96
    %v773 = vpop.permute.xlu0 %772
    %774 = vrot.lane.b32.xlu0 %v682, 96
    %v775 = vpop.permute.xlu0 %774
    %v779 = vsel %vm749, %v770, 0
    %781 = vmatpush.msra.mxu0 0.0
    %782 = vmatpush.msra.mxu0 0.0
    %783 = vmatpush.msra.mxu0 0.0
    %784 = vmatpush.msra.mxu0 0.0
    %785 = vmatpush.msra.mxu0 0.0
    %786 = vmatpush.msra.mxu0 0.0
    %787 = vmatpush.msra.mxu0 0.0
    %788 = vmatpush.msra.mxu0 0.0
    %789 = vmatpush.msra.mxu0 0.0
    %790 = vmatpush.msra.mxu0 0.0
    %791 = vmatpush.msra.mxu0 0.0
    %792 = vmatpush.msra.mxu0 0.0
    %793 = vmatpush.msra.mxu0 0.0
    %794 = vmatpush.msra.mxu0 0.0
    %795 = vmatpush.msra.mxu0 %v775
    %796 = vmatpush.msra.mxu0 %v773
    %797 = vmatmul.f32.gmra.mxu0 %v779
    %v798 = vpop.f32.mrf.mxu0
    %v799 = vadd.f32 0.0, %v798
    %800 = vdwg.mxu0
    %801 = vrot.lane.b32.xlu0 %v685, 96
    %v802 = vpop.permute.xlu0 %801
    %803 = vrot.lane.b32.xlu0 %v688, 96
    %v804 = vpop.permute.xlu0 %803
    %v808 = vsel %vm749, %v771, 0
    %810 = vmatpush.msra.mxu0 0.0
    %811 = vmatpush.msra.mxu0 0.0
    %812 = vmatpush.msra.mxu0 0.0
    %813 = vmatpush.msra.mxu0 0.0
    %814 = vmatpush.msra.mxu0 0.0
    %815 = vmatpush.msra.mxu0 0.0
    %816 = vmatpush.msra.mxu0 0.0
    %817 = vmatpush.msra.mxu0 0.0
    %818 = vmatpush.msra.mxu0 0.0
    %819 = vmatpush.msra.mxu0 0.0
    %820 = vmatpush.msra.mxu0 0.0
    %821 = vmatpush.msra.mxu0 0.0
    %822 = vmatpush.msra.mxu0 0.0
    %823 = vmatpush.msra.mxu0 0.0
    %824 = vmatpush.msra.mxu0 %v804
    %825 = vmatpush.msra.mxu0 %v802
    %826 = vmatmul.f32.gmra.mxu0 %v808
    %v827 = vpop.f32.mrf.mxu0
    %v828 = vadd.f32 0.0, %v827
    %829 = vdwg.mxu0
    %830 = vrot.lane.b32.xlu0 %v639, 120
    %v831 = vpop.permute.xlu0 %830
    %832 = vrot.lane.b32.xlu0 %v679, 120
    %v833 = vpop.permute.xlu0 %832
    %834 = vrot.lane.b32.xlu0 %v682, 120
    %v835 = vpop.permute.xlu0 %834
    %v836 = vsel %vm690, %v831, 0
    %v838 = vsel %vm690, %v833, 0
    %v840 = vsel %vm690, %v835, 0
    %842 = vmatpush.xpose.msra.mxu0 0.0
    %843 = vmatpush.xpose.msra.mxu0 0.0
    %844 = vmatpush.xpose.msra.mxu0 0.0
    %845 = vmatpush.xpose.msra.mxu0 0.0
    %846 = vmatpush.xpose.msra.mxu0 0.0
    %847 = vmatpush.xpose.msra.mxu0 0.0
    %848 = vmatpush.xpose.msra.mxu0 0.0
    %849 = vmatpush.xpose.msra.mxu0 0.0
    %850 = vmatpush.xpose.msra.mxu0 0.0
    %851 = vmatpush.xpose.msra.mxu0 0.0
    %852 = vmatpush.xpose.msra.mxu0 0.0
    %853 = vmatpush.xpose.msra.mxu0 0.0
    %854 = vmatpush.xpose.msra.mxu0 0.0
    %855 = vmatpush.xpose.msra.mxu0 0.0
    %856 = vmatpush.xpose.msra.mxu0 %v840
    %857 = vmatpush.xpose.msra.mxu0 %v838
    %858 = vmatmul.f32.gmra.mxu0 %v836
    %v859 = vpop.f32.mrf.mxu0
    %v860 = vadd.f32 0.0, %v859
    %861 = vdwg.mxu0
    %862 = vrot.lane.b32.xlu0 %v642, 120
    %v863 = vpop.permute.xlu0 %862
    %864 = vrot.lane.b32.xlu0 %v685, 120
    %v865 = vpop.permute.xlu0 %864
    %866 = vrot.lane.b32.xlu0 %v688, 120
    %v867 = vpop.permute.xlu0 %866
    %v868 = vsel %vm690, %v863, 0
    %v870 = vsel %vm690, %v865, 0
    %v872 = vsel %vm690, %v867, 0
    %874 = vmatpush.xpose.msra.mxu0 0.0
    %875 = vmatpush.xpose.msra.mxu0 0.0
    %876 = vmatpush.xpose.msra.mxu0 0.0
    %877 = vmatpush.xpose.msra.mxu0 0.0
    %878 = vmatpush.xpose.msra.mxu0 0.0
    %879 = vmatpush.xpose.msra.mxu0 0.0
    %880 = vmatpush.xpose.msra.mxu0 0.0
    %881 = vmatpush.xpose.msra.mxu0 0.0
    %882 = vmatpush.xpose.msra.mxu0 0.0
    %883 = vmatpush.xpose.msra.mxu0 0.0
    %884 = vmatpush.xpose.msra.mxu0 0.0
    %885 = vmatpush.xpose.msra.mxu0 0.0
    %886 = vmatpush.xpose.msra.mxu0 0.0
    %887 = vmatpush.xpose.msra.mxu0 0.0
    %888 = vmatpush.xpose.msra.mxu0 %v872
    %889 = vmatpush.xpose.msra.mxu0 %v870
    %890 = vmatmul.f32.gmra.mxu0 %v868
    %v891 = vpop.f32.mrf.mxu0
    %v892 = vadd.f32 0.0, %v891
    %893 = vdwg.mxu0
    %v894 = vsel %vm749, %v860, -inf
    %895 = vmax.xlane.f32.xlu0 %v894
    %v896 = vpop.xlane.xlu0 %895
    %v897 = vsel %vm749, %v892, -inf
    %898 = vmax.xlane.f32.xlu0 %v897
    %v899 = vpop.xlane.xlu0 %898
    %v900 = vsub.f32 %v860, %v896
    %v901 = vsub.f32 %v892, %v899
    %v902 = vmul.f32 %v900, 1.442695
    %v903 = vpow.pop %v902
    %v904 = vmul.f32 %v901, 1.442695
    %v905 = vpow.pop %v904
    %v906 = vsel %vm749, %v903, 0.0
    %907 = vadd.xlane.f32.xlu0 %v906
    %v908 = vpop.xlane.xlu0 %907
    %v909 = vsel %vm749, %v905, 0.0
    %910 = vadd.xlane.f32.xlu0 %v909
    %v911 = vpop.xlane.xlu0 %910
    %v912 = vrcp.pop %v908
    %v913 = vrcp.pop %v911
    %v914 = vmul.f32 %v903, %v912
    %v915 = vmul.f32 %v905, %v913
    %916 = vrot.lane.b32.xlu0 %v679, 88
    %v917 = vpop.permute.xlu0 %916
    %918 = vrot.lane.b32.xlu0 %v682, 88
    %v919 = vpop.permute.xlu0 %918
    %v923 = vsel %vm749, %v914, 0
    %925 = vmatpush.msra.mxu0 0.0
    %926 = vmatpush.msra.mxu0 0.0
    %927 = vmatpush.msra.mxu0 0.0
    %928 = vmatpush.msra.mxu0 0.0
    %929 = vmatpush.msra.mxu0 0.0
    %930 = vmatpush.msra.mxu0 0.0
    %931 = vmatpush.msra.mxu0 0.0
    %932 = vmatpush.msra.mxu0 0.0
    %933 = vmatpush.msra.mxu0 0.0
    %934 = vmatpush.msra.mxu0 0.0
    %935 = vmatpush.msra.mxu0 0.0
    %936 = vmatpush.msra.mxu0 0.0
    %937 = vmatpush.msra.mxu0 0.0
    %938 = vmatpush.msra.mxu0 0.0
    %939 = vmatpush.msra.mxu0 %v919
    %940 = vmatpush.msra.mxu0 %v917
    %941 = vmatmul.f32.gmra.mxu0 %v923
    %v942 = vpop.f32.mrf.mxu0
    %v943 = vadd.f32 0.0, %v942
    %944 = vdwg.mxu0
    %945 = vrot.lane.b32.xlu0 %v685, 88
    %v946 = vpop.permute.xlu0 %945
    %947 = vrot.lane.b32.xlu0 %v688, 88
    %v948 = vpop.permute.xlu0 %947
    %v952 = vsel %vm749, %v915, 0
    %954 = vmatpush.msra.mxu0 0.0
    %955 = vmatpush.msra.mxu0 0.0
    %956 = vmatpush.msra.mxu0 0.0
    %957 = vmatpush.msra.mxu0 0.0
    %958 = vmatpush.msra.mxu0 0.0
    %959 = vmatpush.msra.mxu0 0.0
    %960 = vmatpush.msra.mxu0 0.0
    %961 = vmatpush.msra.mxu0 0.0
    %962 = vmatpush.msra.mxu0 0.0
    %963 = vmatpush.msra.mxu0 0.0
    %964 = vmatpush.msra.mxu0 0.0
    %965 = vmatpush.msra.mxu0 0.0
    %966 = vmatpush.msra.mxu0 0.0
    %967 = vmatpush.msra.mxu0 0.0
    %968 = vmatpush.msra.mxu0 %v948
    %969 = vmatpush.msra.mxu0 %v946
    %970 = vmatmul.f32.gmra.mxu0 %v952
    %v971 = vpop.f32.mrf.mxu0
    %v972 = vadd.f32 0.0, %v971
    %973 = vdwg.mxu0
    %974 = vrot.lane.b32.xlu0 %v639, 112
    %v975 = vpop.permute.xlu0 %974
    %976 = vrot.lane.b32.xlu0 %v679, 112
    %v977 = vpop.permute.xlu0 %976
    %978 = vrot.lane.b32.xlu0 %v682, 112
    %v979 = vpop.permute.xlu0 %978
    %v980 = vsel %vm690, %v975, 0
    %v982 = vsel %vm690, %v977, 0
    %v984 = vsel %vm690, %v979, 0
    %986 = vmatpush.xpose.msra.mxu0 0.0
    %987 = vmatpush.xpose.msra.mxu0 0.0
    %988 = vmatpush.xpose.msra.mxu0 0.0
    %989 = vmatpush.xpose.msra.mxu0 0.0
    %990 = vmatpush.xpose.msra.mxu0 0.0
    %991 = vmatpush.xpose.msra.mxu0 0.0
    %992 = vmatpush.xpose.msra.mxu0 0.0
    %993 = vmatpush.xpose.msra.mxu0 0.0
    %994 = vmatpush.xpose.msra.mxu0 0.0
    %995 = vmatpush.xpose.msra.mxu0 0.0
    %996 = vmatpush.xpose.msra.mxu0 0.0
    %997 = vmatpush.xpose.msra.mxu0 0.0
    %998 = vmatpush.xpose.msra.mxu0 0.0
    %999 = vmatpush.xpose.msra.mxu0 0.0
    %1000 = vmatpush.xpose.msra.mxu0 %v984
    %1001 = vmatpush.xpose.msra.mxu0 %v982
    %1002 = vmatmul.f32.gmra.mxu0 %v980
    %v1003 = vpop.f32.mrf.mxu0
    %v1004 = vadd.f32 0.0, %v1003
    %1005 = vdwg.mxu0
    %1006 = vrot.lane.b32.xlu0 %v642, 112
    %v1007 = vpop.permute.xlu0 %1006
    %1008 = vrot.lane.b32.xlu0 %v685, 112
    %v1009 = vpop.permute.xlu0 %1008
    %1010 = vrot.lane.b32.xlu0 %v688, 112
    %v1011 = vpop.permute.xlu0 %1010
    %v1012 = vsel %vm690, %v1007, 0
    %v1014 = vsel %vm690, %v1009, 0
    %v1016 = vsel %vm690, %v1011, 0
    %1018 = vmatpush.xpose.msra.mxu0 0.0
    %1019 = vmatpush.xpose.msra.mxu0 0.0
    %1020 = vmatpush.xpose.msra.mxu0 0.0
    %1021 = vmatpush.xpose.msra.mxu0 0.0
    %1022 = vmatpush.xpose.msra.mxu0 0.0
    %1023 = vmatpush.xpose.msra.mxu0 0.0
    %1024 = vmatpush.xpose.msra.mxu0 0.0
    %1025 = vmatpush.xpose.msra.mxu0 0.0
    %1026 = vmatpush.xpose.msra.mxu0 0.0
    %1027 = vmatpush.xpose.msra.mxu0 0.0
    %1028 = vmatpush.xpose.msra.mxu0 0.0
    %1029 = vmatpush.xpose.msra.mxu0 0.0
    %1030 = vmatpush.xpose.msra.mxu0 0.0
    %1031 = vmatpush.xpose.msra.mxu0 0.0
    %1032 = vmatpush.xpose.msra.mxu0 %v1016
    %1033 = vmatpush.xpose.msra.mxu0 %v1014
    %1034 = vmatmul.f32.gmra.mxu0 %v1012
    %v1035 = vpop.f32.mrf.mxu0
    %v1036 = vadd.f32 0.0, %v1035
    %1037 = vdwg.mxu0
    %v1038 = vsel %vm749, %v1004, -inf
    %1039 = vmax.xlane.f32.xlu0 %v1038
    %v1040 = vpop.xlane.xlu0 %1039
    %v1041 = vsel %vm749, %v1036, -inf
    %1042 = vmax.xlane.f32.xlu0 %v1041
    %v1043 = vpop.xlane.xlu0 %1042
    %v1044 = vsub.f32 %v1004, %v1040
    %v1045 = vsub.f32 %v1036, %v1043
    %v1046 = vmul.f32 %v1044, 1.442695
    %v1047 = vpow.pop %v1046
    %v1048 = vmul.f32 %v1045, 1.442695
    %v1049 = vpow.pop %v1048
    %v1050 = vsel %vm749, %v1047, 0.0
    %1051 = vadd.xlane.f32.xlu0 %v1050
    %v1052 = vpop.xlane.xlu0 %1051
    %v1053 = vsel %vm749, %v1049, 0.0
    %1054 = vadd.xlane.f32.xlu0 %v1053
    %v1055 = vpop.xlane.xlu0 %1054
    %v1056 = vrcp.pop %v1052
    %v1057 = vrcp.pop %v1055
    %v1058 = vmul.f32 %v1047, %v1056
    %v1059 = vmul.f32 %v1049, %v1057
    %1060 = vrot.lane.b32.xlu0 %v679, 80
    %v1061 = vpop.permute.xlu0 %1060
    %1062 = vrot.lane.b32.xlu0 %v682, 80
    %v1063 = vpop.permute.xlu0 %1062
    %v1067 = vsel %vm749, %v1058, 0
    %1069 = vmatpush.msra.mxu0 0.0
    %1070 = vmatpush.msra.mxu0 0.0
    %1071 = vmatpush.msra.mxu0 0.0
    %1072 = vmatpush.msra.mxu0 0.0
    %1073 = vmatpush.msra.mxu0 0.0
    %1074 = vmatpush.msra.mxu0 0.0
    %1075 = vmatpush.msra.mxu0 0.0
    %1076 = vmatpush.msra.mxu0 0.0
    %1077 = vmatpush.msra.mxu0 0.0
    %1078 = vmatpush.msra.mxu0 0.0
    %1079 = vmatpush.msra.mxu0 0.0
    %1080 = vmatpush.msra.mxu0 0.0
    %1081 = vmatpush.msra.mxu0 0.0
    %1082 = vmatpush.msra.mxu0 0.0
    %1083 = vmatpush.msra.mxu0 %v1063
    %1084 = vmatpush.msra.mxu0 %v1061
    %1085 = vmatmul.f32.gmra.mxu0 %v1067
    %v1086 = vpop.f32.mrf.mxu0
    %v1087 = vadd.f32 0.0, %v1086
    %1088 = vdwg.mxu0
    %1089 = vrot.lane.b32.xlu0 %v685, 80
    %v1090 = vpop.permute.xlu0 %1089
    %1091 = vrot.lane.b32.xlu0 %v688, 80
    %v1092 = vpop.permute.xlu0 %1091
    %v1096 = vsel %vm749, %v1059, 0
    %1098 = vmatpush.msra.mxu0 0.0
    %1099 = vmatpush.msra.mxu0 0.0
    %1100 = vmatpush.msra.mxu0 0.0
    %1101 = vmatpush.msra.mxu0 0.0
    %1102 = vmatpush.msra.mxu0 0.0
    %1103 = vmatpush.msra.mxu0 0.0
    %1104 = vmatpush.msra.mxu0 0.0
    %1105 = vmatpush.msra.mxu0 0.0
    %1106 = vmatpush.msra.mxu0 0.0
    %1107 = vmatpush.msra.mxu0 0.0
    %1108 = vmatpush.msra.mxu0 0.0
    %1109 = vmatpush.msra.mxu0 0.0
    %1110 = vmatpush.msra.mxu0 0.0
    %1111 = vmatpush.msra.mxu0 0.0
    %1112 = vmatpush.msra.mxu0 %v1092
    %1113 = vmatpush.msra.mxu0 %v1090
    %1114 = vmatmul.f32.gmra.mxu0 %v1096
    %v1115 = vpop.f32.mrf.mxu0
    %v1116 = vadd.f32 0.0, %v1115
    %1117 = vdwg.mxu0
    %1118 = vrot.lane.b32.xlu0 %v639, 104
    %v1119 = vpop.permute.xlu0 %1118
    %1120 = vrot.lane.b32.xlu0 %v679, 104
    %v1121 = vpop.permute.xlu0 %1120
    %1122 = vrot.lane.b32.xlu0 %v682, 104
    %v1123 = vpop.permute.xlu0 %1122
    %v1124 = vsel %vm690, %v1119, 0
    %v1126 = vsel %vm690, %v1121, 0
    %v1128 = vsel %vm690, %v1123, 0
    %1130 = vmatpush.xpose.msra.mxu0 0.0
    %1131 = vmatpush.xpose.msra.mxu0 0.0
    %1132 = vmatpush.xpose.msra.mxu0 0.0
    %1133 = vmatpush.xpose.msra.mxu0 0.0
    %1134 = vmatpush.xpose.msra.mxu0 0.0
    %1135 = vmatpush.xpose.msra.mxu0 0.0
    %1136 = vmatpush.xpose.msra.mxu0 0.0
    %1137 = vmatpush.xpose.msra.mxu0 0.0
    %1138 = vmatpush.xpose.msra.mxu0 0.0
    %1139 = vmatpush.xpose.msra.mxu0 0.0
    %1140 = vmatpush.xpose.msra.mxu0 0.0
    %1141 = vmatpush.xpose.msra.mxu0 0.0
    %1142 = vmatpush.xpose.msra.mxu0 0.0
    %1143 = vmatpush.xpose.msra.mxu0 0.0
    %1144 = vmatpush.xpose.msra.mxu0 %v1128
    %1145 = vmatpush.xpose.msra.mxu0 %v1126
    %1146 = vmatmul.f32.gmra.mxu0 %v1124
    %v1147 = vpop.f32.mrf.mxu0
    %v1148 = vadd.f32 0.0, %v1147
    %1149 = vdwg.mxu0
    %1150 = vrot.lane.b32.xlu0 %v642, 104
    %v1151 = vpop.permute.xlu0 %1150
    %1152 = vrot.lane.b32.xlu0 %v685, 104
    %v1153 = vpop.permute.xlu0 %1152
    %1154 = vrot.lane.b32.xlu0 %v688, 104
    %v1155 = vpop.permute.xlu0 %1154
    %v1156 = vsel %vm690, %v1151, 0
    %v1158 = vsel %vm690, %v1153, 0
    %v1160 = vsel %vm690, %v1155, 0
    %1162 = vmatpush.xpose.msra.mxu0 0.0
    %1163 = vmatpush.xpose.msra.mxu0 0.0
    %1164 = vmatpush.xpose.msra.mxu0 0.0
    %1165 = vmatpush.xpose.msra.mxu0 0.0
    %1166 = vmatpush.xpose.msra.mxu0 0.0
    %1167 = vmatpush.xpose.msra.mxu0 0.0
    %1168 = vmatpush.xpose.msra.mxu0 0.0
    %1169 = vmatpush.xpose.msra.mxu0 0.0
    %1170 = vmatpush.xpose.msra.mxu0 0.0
    %1171 = vmatpush.xpose.msra.mxu0 0.0
    %1172 = vmatpush.xpose.msra.mxu0 0.0
    %1173 = vmatpush.xpose.msra.mxu0 0.0
    %1174 = vmatpush.xpose.msra.mxu0 0.0
    %1175 = vmatpush.xpose.msra.mxu0 0.0
    %1176 = vmatpush.xpose.msra.mxu0 %v1160
    %1177 = vmatpush.xpose.msra.mxu0 %v1158
    %1178 = vmatmul.f32.gmra.mxu0 %v1156
    %v1179 = vpop.f32.mrf.mxu0
    %v1180 = vadd.f32 0.0, %v1179
    %1181 = vdwg.mxu0
    %v1182 = vsel %vm749, %v1148, -inf
    %1183 = vmax.xlane.f32.xlu0 %v1182
    %v1184 = vpop.xlane.xlu0 %1183
    %v1185 = vsel %vm749, %v1180, -inf
    %1186 = vmax.xlane.f32.xlu0 %v1185
    %v1187 = vpop.xlane.xlu0 %1186
    %v1188 = vsub.f32 %v1148, %v1184
    %v1189 = vsub.f32 %v1180, %v1187
    %v1190 = vmul.f32 %v1188, 1.442695
    %v1191 = vpow.pop %v1190
    %v1192 = vmul.f32 %v1189, 1.442695
    %v1193 = vpow.pop %v1192
    %v1194 = vsel %vm749, %v1191, 0.0
    %1195 = vadd.xlane.f32.xlu0 %v1194
    %v1196 = vpop.xlane.xlu0 %1195
    %v1197 = vsel %vm749, %v1193, 0.0
    %1198 = vadd.xlane.f32.xlu0 %v1197
    %v1199 = vpop.xlane.xlu0 %1198
    %v1200 = vrcp.pop %v1196
    %v1201 = vrcp.pop %v1199
    %v1202 = vmul.f32 %v1191, %v1200
    %v1203 = vmul.f32 %v1193, %v1201
    %1204 = vrot.lane.b32.xlu0 %v679, 72
    %v1205 = vpop.permute.xlu0 %1204
    %1206 = vrot.lane.b32.xlu0 %v682, 72
    %v1207 = vpop.permute.xlu0 %1206
    %v1211 = vsel %vm749, %v1202, 0
    %1213 = vmatpush.msra.mxu0 0.0
    %1214 = vmatpush.msra.mxu0 0.0
    %1215 = vmatpush.msra.mxu0 0.0
    %1216 = vmatpush.msra.mxu0 0.0
    %1217 = vmatpush.msra.mxu0 0.0
    %1218 = vmatpush.msra.mxu0 0.0
    %1219 = vmatpush.msra.mxu0 0.0
    %1220 = vmatpush.msra.mxu0 0.0
    %1221 = vmatpush.msra.mxu0 0.0
    %1222 = vmatpush.msra.mxu0 0.0
    %1223 = vmatpush.msra.mxu0 0.0
    %1224 = vmatpush.msra.mxu0 0.0
    %1225 = vmatpush.msra.mxu0 0.0
    %1226 = vmatpush.msra.mxu0 0.0
    %1227 = vmatpush.msra.mxu0 %v1207
    %1228 = vmatpush.msra.mxu0 %v1205
    %1229 = vmatmul.f32.gmra.mxu0 %v1211
    %v1230 = vpop.f32.mrf.mxu0
    %v1231 = vadd.f32 0.0, %v1230
    %1232 = vdwg.mxu0
    %1233 = vrot.lane.b32.xlu0 %v685, 72
    %v1234 = vpop.permute.xlu0 %1233
    %1235 = vrot.lane.b32.xlu0 %v688, 72
    %v1236 = vpop.permute.xlu0 %1235
    %v1240 = vsel %vm749, %v1203, 0
    %1242 = vmatpush.msra.mxu0 0.0
    %1243 = vmatpush.msra.mxu0 0.0
    %1244 = vmatpush.msra.mxu0 0.0
    %1245 = vmatpush.msra.mxu0 0.0
    %1246 = vmatpush.msra.mxu0 0.0
    %1247 = vmatpush.msra.mxu0 0.0
    %1248 = vmatpush.msra.mxu0 0.0
    %1249 = vmatpush.msra.mxu0 0.0
    %1250 = vmatpush.msra.mxu0 0.0
    %1251 = vmatpush.msra.mxu0 0.0
    %1252 = vmatpush.msra.mxu0 0.0
    %1253 = vmatpush.msra.mxu0 0.0
    %1254 = vmatpush.msra.mxu0 0.0
    %1255 = vmatpush.msra.mxu0 0.0
    %1256 = vmatpush.msra.mxu0 %v1236
    %1257 = vmatpush.msra.mxu0 %v1234
    %1258 = vmatmul.f32.gmra.mxu0 %v1240
    %v1259 = vpop.f32.mrf.mxu0
    %v1260 = vadd.f32 0.0, %v1259
    %1261 = vdwg.mxu0
    %1264 = vrot.lane.b32.xlu0 %v943, 8
    %v1265 = vpop.permute.xlu0 %1264
    %1266 = vrot.lane.b32.xlu0 %v972, 8
    %v1267 = vpop.permute.xlu0 %1266
    %1272 = vrot.lane.b32.xlu0 %v1087, 16
    %v1273 = vpop.permute.xlu0 %1272
    %1274 = vrot.lane.b32.xlu0 %v1116, 16
    %v1275 = vpop.permute.xlu0 %1274
    %1280 = vrot.lane.b32.xlu0 %v1231, 24
    %v1281 = vpop.permute.xlu0 %1280
    %1282 = vrot.lane.b32.xlu0 %v1260, 24
    %v1283 = vpop.permute.xlu0 %1282
    %v1286 = vsel %vm690, %v799, %v1265
    %v1287 = vsel %vm690, %v828, %v1267
    %v1288 = vsel %vm749, %v1286, %v1273
    %v1289 = vsel %vm749, %v1287, %v1275
    %vm1290 = vcmask 195584
    %v1291 = vsel %vm1290, %v1288, %v1281
    %v1292 = vsel %vm1290, %v1289, %v1283
    %1293 = vrot.lane.b32.xlu0 %v606, 64
    %v1294 = vpop.permute.xlu0 %1293
    %v1296 = vsel %vm236, %v1291, %v544
    %v1297 = vsel %vm236, %v1292, %v1294
    %v1298 = vld [vmem:[#allocation16] sm:$0xff]
    %v1299 = vld [vmem:[#allocation16 + $0x8] sm:$0xff]
    %v1300 = vld [vmem:[#allocation16 + $0x10] sm:$0xff]
    %v1301 = vld [vmem:[#allocation16 + $0x18] sm:$0xff]
    %v1302 = vld [vmem:[#allocation16 + $0x20] sm:$0xff]
    %v1303 = vld [vmem:[#allocation16 + $0x28] sm:$0xff]
    %v1304 = vld [vmem:[#allocation16 + $0x30] sm:$0xff]
    %v1305 = vld [vmem:[#allocation16 + $0x38] sm:$0xff]
    %v1306 = vperm.slane %v231, 0
    %v1308 = vsel %vm417, %v1296, 0
    %v1311 = vsel %vm417, %v1297, 0
    %1313 = vmatpush.msra.mxu0 0.0
    %1314 = vmatpush.msra.mxu0 0.0
    %1315 = vmatpush.msra.mxu0 0.0
    %1316 = vmatpush.msra.mxu0 0.0
    %1317 = vmatpush.msra.mxu0 0.0
    %1318 = vmatpush.msra.mxu0 0.0
    %1319 = vmatpush.msra.mxu0 0.0
    %1320 = vmatpush.msra.mxu0 0.0
    %1321 = vmatpush.msra.mxu0 %v1305
    %1322 = vmatpush.msra.mxu0 %v1304
    %1323 = vmatpush.msra.mxu0 %v1303
    %1324 = vmatpush.msra.mxu0 %v1302
    %1325 = vmatpush.msra.mxu0 %v1301
    %1326 = vmatpush.msra.mxu0 %v1300
    %1327 = vmatpush.msra.mxu0 %v1299
    %1328 = vmatpush.msra.mxu0 %v1298
    %1329 = vmatmul.f32.gmra.mxu0 %v1308
    %v1330 = vpop.f32.mrf.mxu0
    %v1331 = vadd.f32 %v1306, %v1330
    %1332 = vmatmul.f32.gmra.mxu0 %v1311
    %v1333 = vpop.f32.mrf.mxu0
    %v1334 = vadd.f32 %v1306, %v1333
    %1335 = vdwg.mxu0
    %v1336 = vxor.u32 %v1331, 2147483648
    %v1337 = vxor.u32 %v1334, 2147483648
    %v1338 = vmul.f32 %v1336, 1.442695
    %v1339 = vpow.pop %v1338
    %v1340 = vmul.f32 %v1337, 1.442695
    %v1341 = vpow.pop %v1340
    %v1342 = vadd.f32 %v1339, 1.0
    %v1343 = vadd.f32 %v1341, 1.0
    %v1344 = vrcp.pop %v1342
    %v1345 = vmul.f32 %v1342, %v1344
    %v1346 = vsub.f32 1.0, %v1345
    %v1347 = vmul.f32 %v1344, %v1346
    %v1348 = vadd.f32 %v1344, %v1347
    %vm1349 = vweird.f32 %v1342
    %vm1350 = vweird.f32 %v1344
    %vm1351 = vmor %vm1349, %vm1350
    %v1352 = vsel %vm1351, %v1344, %v1348
    %v1353 = vand.u32 2147483647, %v1342
    %vm1354 = vcmp.eq.f32.partialorder %v1353, 8.507059e+37
    %v1355 = vand.u32 %v1342, 2147483648
    %v1356 = vor.u32 1.1754944e-38, %v1355
    %v1357 = vsel %vm1354, %v1356, %v1352
    %v1358 = vmul.f32 1.0, %v1357
    %v1359 = vrcp.pop %v1343
    %v1360 = vmul.f32 %v1343, %v1359
    %v1361 = vsub.f32 1.0, %v1360
    %v1362 = vmul.f32 %v1359, %v1361
    %v1363 = vadd.f32 %v1359, %v1362
    %vm1364 = vweird.f32 %v1343
    %vm1365 = vweird.f32 %v1359
    %vm1366 = vmor %vm1364, %vm1365
    %v1367 = vsel %vm1366, %v1359, %v1363
    %v1368 = vand.u32 2147483647, %v1343
    %vm1369 = vcmp.eq.f32.partialorder %v1368, 8.507059e+37
    %v1370 = vand.u32 %v1343, 2147483648
    %v1371 = vor.u32 1.1754944e-38, %v1370
    %v1372 = vsel %vm1369, %v1371, %v1367
    %v1373 = vmul.f32 1.0, %v1372
    %1376 = vrot.lane.b32.xlu0 %v1358, 96
    %v1377 = vpop.permute.xlu0 %1376
    %1378 = vrot.lane.b32.xlu0 %v1373, 96
    %v1379 = vpop.permute.xlu0 %1378
    %v1382 = vmul.f32 %v1331, %v1377
    %v1383 = vmul.f32 %v1334, %v1379
    %v1384 = vld [vmem:[#allocation17] sm:$0xff]
    %v1385 = vld [vmem:[#allocation17 + $0x8] sm:$0xff]
    %v1386 = vld [vmem:[#allocation17 + $0x10] sm:$0xff]
    %v1387 = vld [vmem:[#allocation17 + $0x18] sm:$0xff]
    %v1388 = vperm.slane %v233, 0
    %v1390 = vsel %vm236, %v1382, 0
    %v1393 = vsel %vm236, %v1383, 0
    %1395 = vmatpush.msra.mxu0 0.0
    %1396 = vmatpush.msra.mxu0 0.0
    %1397 = vmatpush.msra.mxu0 0.0
    %1398 = vmatpush.msra.mxu0 0.0
    %1399 = vmatpush.msra.mxu0 0.0
    %1400 = vmatpush.msra.mxu0 0.0
    %1401 = vmatpush.msra.mxu0 0.0
    %1402 = vmatpush.msra.mxu0 0.0
    %1403 = vmatpush.msra.mxu0 0.0
    %1404 = vmatpush.msra.mxu0 0.0
    %1405 = vmatpush.msra.mxu0 0.0
    %1406 = vmatpush.msra.mxu0 0.0
    %1407 = vmatpush.msra.mxu0 %v1387
    %1408 = vmatpush.msra.mxu0 %v1386
    %1409 = vmatpush.msra.mxu0 %v1385
    %1410 = vmatpush.msra.mxu0 %v1384
    %1411 = vmatmul.f32.gmra.mxu0 %v1390
    %v1412 = vpop.f32.mrf.mxu0
    %v1413 = vadd.f32 %v1388, %v1412
    %1414 = vmatmul.f32.gmra.mxu0 %v1393
    %v1415 = vpop.f32.mrf.mxu0
    %v1416 = vadd.f32 %v1388, %v1415
    %1417 = vdwg.mxu0
    %v1418 = vsel %vm236, %v1413, 0.0
    %1419 = vadd.xlane.f32.xlu0 %v1418
    %v1420 = vpop.xlane.xlu0 %1419
    %v1421 = vsel %vm236, %v1416, 0.0
    %1422 = vadd.xlane.f32.xlu0 %v1421
    %v1423 = vpop.xlane.xlu0 %1422
    %v1424 = vrcp.pop 32.0
    %v1425 = vmul.f32 32.0, %v1424
    %v1426 = vsub.f32 1.0, %v1425
    %v1427 = vmul.f32 %v1424, %v1426
    %v1428 = vadd.f32 %v1424, %v1427
    %vm1429 = vweird.f32 %v1424
    %v1430 = vsel %vm1429, %v1424, %v1428
    %v1431 = vmul.f32 %v1420, %v1430
    %v1432 = vmul.f32 %v1423, %v1430
    %v1433 = vsub.f32 %v1413, %v1431
    %v1434 = vsub.f32 %v1416, %v1432
    %v1435 = vmul.f32 %v1433, %v1433
    %v1436 = vmul.f32 %v1434, %v1434
    %v1437 = vsel %vm236, %v1435, 0.0
    %1438 = vadd.xlane.f32.xlu0 %v1437
    %v1439 = vpop.xlane.xlu0 %1438
    %v1440 = vsel %vm236, %v1436, 0.0
    %1441 = vadd.xlane.f32.xlu0 %v1440
    %v1442 = vpop.xlane.xlu0 %1441
    %v1443 = vmul.f32 %v1439, 0.032258064
    %v1444 = vmul.f32 %v1442, 0.032258064
    %v1445 = vrsqrt.pop %v1443
    %v1446 = vmul.f32 %v1445, %v1443
    %v1447 = vmul.f32 %v1446, %v1445
    %v1448 = vmul.f32 0.5, %v1447
    %v1449 = vsub.f32 1.5, %v1448
    %v1450 = vmul.f32 %v1445, %v1449
    %v1451 = vmul.f32 %v1443, %v1450
    %vm1452 = vcmp.eq.f32.partialorder %v1443, inf
    %v1453 = vsel %vm1452, %v1443, %v1451
    %vm1454 = vcmp.eq.f32.partialorder %v1443, 0.0
    %v1455 = vand.u32 %v1443, 2147483648
    %v1456 = vsel %vm1454, %v1455, %v1453
    %v1457 = vrsqrt.pop %v1444
    %v1458 = vmul.f32 %v1457, %v1444
    %v1459 = vmul.f32 %v1458, %v1457
    %v1460 = vmul.f32 0.5, %v1459
    %v1461 = vsub.f32 1.5, %v1460
    %v1462 = vmul.f32 %v1457, %v1461
    %v1463 = vmul.f32 %v1444, %v1462
    %vm1464 = vcmp.eq.f32.partialorder %v1444, inf
    %v1465 = vsel %vm1464, %v1444, %v1463
    %vm1466 = vcmp.eq.f32.partialorder %v1444, 0.0
    %v1467 = vand.u32 %v1444, 2147483648
    %v1468 = vsel %vm1466, %v1467, %v1465
    %v1469 = vperm.slane %v234, 0
    %v1470 = vmul.f32 %v1469, %v1433
    %v1471 = vmul.f32 %v1469, %v1434
    %v1472 = vadd.f32 %v1456, 1e-06
    %v1473 = vadd.f32 %v1468, 1e-06
    %v1474 = vrcp.pop %v1472
    %v1475 = vrcp.pop %v1473
    %v1476 = vmul.f32 %v1470, %v1474
    %v1477 = vmul.f32 %v1471, %v1475
    %v1478 = vperm.slane %v235, 0
    %v1479 = vadd.f32 %v1476, %v1478
    %v1480 = vadd.f32 %v1477, %v1478
    %1483 = vrot.lane.b32.xlu0 %v1479, 96
    %v1484 = vpop.permute.xlu0 %1483
    %1485 = vrot.lane.b32.xlu0 %v1480, 96
    %v1486 = vpop.permute.xlu0 %1485
    %v1489 = vadd.f32 %v477, %v1484
    %v1490 = vadd.f32 %v606, %v1486
    %v1491 = vld [vmem:[#allocation19] sm:$0xff]
    %v1492 = vld [vmem:[#allocation19 + $0x8] sm:$0xff]
    %v1493 = vld [vmem:[#allocation19 + $0x10] sm:$0xff]
    %v1494 = vld [vmem:[#allocation19 + $0x18] sm:$0xff]
    %v1495 = vld [vmem:[%s14] sm:$0x1]
    %v1497 = vperm.slane %v1495, 0
    %1501 = vrot.lane.b32.xlu0 %v1489, 32
    %v1502 = vpop.permute.xlu0 %1501
    %1503 = vrot.lane.b32.xlu0 %v1490, 32
    %v1504 = vpop.permute.xlu0 %1503
    %v1505 = vsel %vm236, %v1502, 0
    %v1507 = vsel %vm236, %v1504, 0
    %1509 = vmatpush.msra.mxu0 0.0
    %1510 = vmatpush.msra.mxu0 0.0
    %1511 = vmatpush.msra.mxu0 0.0
    %1512 = vmatpush.msra.mxu0 0.0
    %1513 = vmatpush.msra.mxu0 0.0
    %1514 = vmatpush.msra.mxu0 0.0
    %1515 = vmatpush.msra.mxu0 0.0
    %1516 = vmatpush.msra.mxu0 0.0
    %1517 = vmatpush.msra.mxu0 0.0
    %1518 = vmatpush.msra.mxu0 0.0
    %1519 = vmatpush.msra.mxu0 0.0
    %1520 = vmatpush.msra.mxu0 0.0
    %1521 = vmatpush.msra.mxu0 %v1494
    %1522 = vmatpush.msra.mxu0 %v1493
    %1523 = vmatpush.msra.mxu0 %v1492
    %1524 = vmatpush.msra.mxu0 %v1491
    %1525 = vmatmul.f32.gmra.mxu0 %v1505
    %v1526 = vpop.f32.mrf.mxu0
    %v1527 = vadd.f32 %v1497, %v1526
    %1528 = vmatmul.f32.gmra.mxu0 %v1507
    %v1529 = vpop.f32.mrf.mxu0
    %v1530 = vadd.f32 %v1497, %v1529
    %1531 = vdwg.mxu0
    %1532 = vst [vmem:[#allocation20] sm:$0xff] %v1527
    %1533 = vst [vmem:[#allocation20 + $0x8] sm:$0xff] %v1530
    // Predicated region
    $region106: #{tpu_custom_call.1} parent=1 // pred_check
      _
    $region107: #{tpu_custom_call.1} parent=1 // pred_check_branch
      %1535 = sbr.rel (0) target = $region109
    $region108: #{tpu_custom_call.1} parent=1 // pred_region
      %1537 = vsyncadd [#allocation4], 0
      %s1538 = sshll.u32 [#allocation20], 4
      %s1539 = int_to_ptr.vmem [resolvable:$true] %s1538
      %s1540 = sshll.u32 %s15, 4
      %s1541 = int_to_ptr.hbm [resolvable:$true] %s1540
      %1546 = dma.vmem_to_hbm [thread:$0]  %s1539, 256, %s1541, [#allocation4], 128, 128, 8
    $region109: #{tpu_custom_call.1} parent=1 // pred_fallthru
      _
    // Predicated region
    $region110: #{tpu_custom_call.1} parent=1 // pred_check
      _
    $region111: #{tpu_custom_call.1} parent=1 // pred_check_branch
      %1548 = sbr.rel (0) target = $region113
    $region112: #{tpu_custom_call.1} parent=1 // pred_region
      %1550 = dma.done [#allocation4], 256
    $region113: #{tpu_custom_call.1} parent=1 // pred_fallthru
      _
    %1551 = vsyncpa [#allocation3], 1
    %1552 = vsyncpa [#allocation6], 1
    %1553 = vsyncpa [#allocation9], 1
    %1554 = vsyncpa [#allocation12], 1
    %1555 = vsyncpa [#allocation15], 1
    %1556 = vsyncpa [#allocation18], 1
    %1557 = vsyncpa [#allocation4], 1

</llo_original>
